<compile_context>
chip_gen: v7x
topology: tpu7x:2x2x1
jax: 0.10.0
libtpu: 0.0.40
codegen_flags: <defaults>
</compile_context>

<pallas_src>
import jax
import jax.numpy as jnp
from jax.experimental import pallas as pl
from jax.experimental.pallas import tpu as pltpu

HIDDEN_DIMS = (512, 512, 512, 256, 256, 128)
LANE = 128
SUBLANE = 8


def _round_up(x, m):
    return (x + m - 1) // m * m


def _dqn_mlp_kernel(
    x_ref,
    w1_ref, b1_ref,
    w2_ref, b2_ref,
    w3_ref, b3_ref,
    w4_ref, b4_ref,
    w5_ref, b5_ref,
    w6_ref, b6_ref,
    w7_ref, b7_ref,
    o_ref,
):
    """Fused 7-layer MLP: bf16 MXU operands, f32 accumulation + f32 bias/ReLU."""
    h = x_ref[...]                                    # bf16 (TB, in_pad)

    def dense_relu(h, w_ref, b_ref):
        y = jnp.dot(h, w_ref[...], preferred_element_type=jnp.float32)
        y = y + b_ref[...]                            # (1, out) f32 broadcast
        return jnp.maximum(y, 0.0).astype(jnp.bfloat16)

    h = dense_relu(h, w1_ref, b1_ref)
    h = dense_relu(h, w2_ref, b2_ref)
    h = dense_relu(h, w3_ref, b3_ref)
    h = dense_relu(h, w4_ref, b4_ref)
    h = dense_relu(h, w5_ref, b5_ref)
    h = dense_relu(h, w6_ref, b6_ref)

    # Final layer: no ReLU. Output is lane-dense (padded to 128 cols), f32.
    y = jnp.dot(h, w7_ref[...], preferred_element_type=jnp.float32)
    o_ref[...] = (y + b7_ref[...]).astype(o_ref.dtype)


def prepare_params(params, input_size):
    """Cast / zero-pad parameters for the kernel.

    params: list of (W, b) with W shaped (in, out) f32 and b shaped (out,) f32.
    Returns (in_pad, out_pad, flat list [w1_bf16, b1_f32_2d, ..., w7, b7]).
    Padding with zeros is exactly value-preserving for the matmul.
    """
    in_pad = _round_up(input_size, LANE)
    out_size = params[-1][0].shape[1]
    out_pad = _round_up(out_size, LANE)

    flat = []
    n = len(params)
    for i, (w, b) in enumerate(params):
        w = w.astype(jnp.float32)
        b = b.astype(jnp.float32)
        if i == 0 and w.shape[0] != in_pad:
            w = jnp.pad(w, ((0, in_pad - w.shape[0]), (0, 0)))
        if i == n - 1 and w.shape[1] != out_pad:
            w = jnp.pad(w, ((0, 0), (0, out_pad - w.shape[1])))
            b = jnp.pad(b, (0, out_pad - b.shape[0]))
        flat.append(w.astype(jnp.bfloat16))           # MXU-native weight dtype
        flat.append(b.reshape(1, -1))                 # f32 bias, (1, out)
    return in_pad, out_pad, flat


def dqn_forward(x, params, *, batch_tile=128):
    """x: (batch, input_size) f32; params: list of (W (in, out), b (out,)) f32."""
    batch, input_size = x.shape
    output_size = params[-1][0].shape[1]

    in_pad, out_pad, flat_params = prepare_params(params, input_size)

    # Lane-dense, sublane-aligned activation block (zero padded).
    pb = _round_up(batch, SUBLANE)
    x_pad = jnp.zeros((pb, in_pad), jnp.bfloat16)
    x_pad = x_pad.at[:batch, :input_size].set(x.astype(jnp.bfloat16))

    # Batch tiling: "parallel" grid axis shards rows across TensorCores (v7x);
    # small batches run as a single full-array tile.
    if pb % batch_tile == 0:
        tb = batch_tile
    else:
        tb = pb
    grid = (pb // tb,)

    in_specs = [pl.BlockSpec((tb, in_pad), lambda i: (i, 0))]
    for arr in flat_params:
        # Weights/biases: same block every grid step -> stays VMEM-resident.
        in_specs.append(pl.BlockSpec(arr.shape, lambda i: (0, 0)))

    out = pl.pallas_call(
        _dqn_mlp_kernel,
        out_shape=jax.ShapeDtypeStruct((pb, out_pad), jnp.float32),
        grid=grid,
        in_specs=in_specs,
        out_specs=pl.BlockSpec((tb, out_pad), lambda i: (i, 0)),
        compiler_params=pltpu.CompilerParams(
            dimension_semantics=("parallel",),
            vmem_limit_bytes=16 << 20,
        ),
    )(x_pad, *flat_params)

    return out[:batch, :output_size]


def init_params(key, input_size, output_size):
    """nn.Linear default init (uniform +/- 1/sqrt(fan_in)); W stored (in, out)."""
    dims = [input_size, *HIDDEN_DIMS, output_size]
    params = []
    for i in range(len(dims) - 1):
        fan_in, fan_out = dims[i], dims[i + 1]
        key, kw, kb = jax.random.split(key, 3)
        bound = 1.0 / jnp.sqrt(jnp.float32(fan_in))
        w = jax.random.uniform(
            kw, (fan_in, fan_out), jnp.float32, minval=-bound, maxval=bound
        )
        b = jax.random.uniform(
            kb, (fan_out,), jnp.float32, minval=-bound, maxval=bound
        )
        params.append((w, b))
    return params


def reference_forward(x, params):
    """Pure-JAX reference with the same numerics as the kernel
    (bf16 operands, f32 accumulation, f32 bias/ReLU)."""
    h = x.astype(jnp.bfloat16)
    n = len(params)
    for i, (w, b) in enumerate(params):
        y = jnp.dot(h, w.astype(jnp.bfloat16),
                    preferred_element_type=jnp.float32) + b
        if i < n - 1:
            h = jnp.maximum(y, 0.0).astype(jnp.bfloat16)
        else:
            h = y
    return h


if __name__ == "__main__":
    key = jax.random.PRNGKey(0)
    key, kx = jax.random.split(key)

    batch = 8
    input_size = 8     # small observation vector
    output_size = 4    # number of actions

    x = jax.random.normal(kx, (batch, input_size), jnp.float32)
    params = init_params(key, input_size, output_size)

    out = dqn_forward(x, params)
    out = jax.block_until_ready(out)

    ref = reference_forward(x, params)
    assert out.shape == (batch, output_size)
    # bf16 weight/activation storage is a deliberate perf trade (see review);
    # tolerance is vs. the numerically-matched bf16 reference.
    assert jnp.allclose(out, ref, atol=2e-2, rtol=2e-2)

    print("KERNEL_OK")
</pallas_src>

<mosaic_0001>
module attributes {stable_mosaic.version = 11 : i64} {
  func.func @_dqn_mlp_kernel(%arg0: i32, %arg1: memref<8x128xbf16, #tpu.memory_space<vmem>>, %arg2: memref<128x512xbf16, #tpu.memory_space<vmem>>, %arg3: memref<1x512xf32, #tpu.memory_space<vmem>>, %arg4: memref<512x512xbf16, #tpu.memory_space<vmem>>, %arg5: memref<1x512xf32, #tpu.memory_space<vmem>>, %arg6: memref<512x512xbf16, #tpu.memory_space<vmem>>, %arg7: memref<1x512xf32, #tpu.memory_space<vmem>>, %arg8: memref<512x256xbf16, #tpu.memory_space<vmem>>, %arg9: memref<1x256xf32, #tpu.memory_space<vmem>>, %arg10: memref<256x256xbf16, #tpu.memory_space<vmem>>, %arg11: memref<1x256xf32, #tpu.memory_space<vmem>>, %arg12: memref<256x128xbf16, #tpu.memory_space<vmem>>, %arg13: memref<1x128xf32, #tpu.memory_space<vmem>>, %arg14: memref<128x128xbf16, #tpu.memory_space<vmem>>, %arg15: memref<1x128xf32, #tpu.memory_space<vmem>>, %arg16: memref<8x128xf32, #tpu.memory_space<vmem>>) attributes {dimension_semantics = [#tpu.dimension_semantics<parallel>], iteration_bounds = array<i64: 1>, scalar_prefetch = 0 : i64, scratch_operands = 0 : i64, tpu.core_type = #tpu.core_type<tc>, window_params = [{transform_indices = @transform_0, window_bounds = array<i64: 8, 128>}, {pipeline_mode = #tpu.pipeline_mode<synchronous>, transform_indices = @transform_1, window_bounds = array<i64: 128, 512>}, {pipeline_mode = #tpu.pipeline_mode<synchronous>, transform_indices = @transform_2, window_bounds = array<i64: 1, 512>}, {pipeline_mode = #tpu.pipeline_mode<synchronous>, transform_indices = @transform_3, window_bounds = array<i64: 512, 512>}, {pipeline_mode = #tpu.pipeline_mode<synchronous>, transform_indices = @transform_4, window_bounds = array<i64: 1, 512>}, {pipeline_mode = #tpu.pipeline_mode<synchronous>, transform_indices = @transform_5, window_bounds = array<i64: 512, 512>}, {pipeline_mode = #tpu.pipeline_mode<synchronous>, transform_indices = @transform_6, window_bounds = array<i64: 1, 512>}, {pipeline_mode = #tpu.pipeline_mode<synchronous>, transform_indices = @transform_7, window_bounds = array<i64: 512, 256>}, {pipeline_mode = #tpu.pipeline_mode<synchronous>, transform_indices = @transform_8, window_bounds = array<i64: 1, 256>}, {pipeline_mode = #tpu.pipeline_mode<synchronous>, transform_indices = @transform_9, window_bounds = array<i64: 256, 256>}, {pipeline_mode = #tpu.pipeline_mode<synchronous>, transform_indices = @transform_10, window_bounds = array<i64: 1, 256>}, {pipeline_mode = #tpu.pipeline_mode<synchronous>, transform_indices = @transform_11, window_bounds = array<i64: 256, 128>}, {pipeline_mode = #tpu.pipeline_mode<synchronous>, transform_indices = @transform_12, window_bounds = array<i64: 1, 128>}, {pipeline_mode = #tpu.pipeline_mode<synchronous>, transform_indices = @transform_13, window_bounds = array<i64: 128, 128>}, {pipeline_mode = #tpu.pipeline_mode<synchronous>, transform_indices = @transform_14, window_bounds = array<i64: 1, 128>}, {transform_indices = @transform_15, window_bounds = array<i64: 8, 128>}]} {
    %c0 = arith.constant 0 : index
    %c0_0 = arith.constant 0 : index
    %0 = vector.load %arg1[%c0, %c0_0] : memref<8x128xbf16, #tpu.memory_space<vmem>>, vector<8x128xbf16>
    %c0_1 = arith.constant 0 : index
    %c0_2 = arith.constant 0 : index
    %1 = vector.load %arg2[%c0_1, %c0_2] : memref<128x512xbf16, #tpu.memory_space<vmem>>, vector<128x512xbf16>
    %cst = arith.constant dense<0.000000e+00> : vector<8x512xf32>
    %2 = tpu.matmul %0, %1, %cst {dimension_numbers = #tpu.dot_dimension_numbers<[1], [0], [0], [1], [0, 0, 1, 1], [], []>} : vector<8x128xbf16>, vector<128x512xbf16>, vector<8x512xf32> -> vector<8x512xf32>
    %c0_3 = arith.constant 0 : index
    %c0_4 = arith.constant 0 : index
    %3 = vector.load %arg3[%c0_3, %c0_4] : memref<1x512xf32, #tpu.memory_space<vmem>>, vector<1x512xf32>
    %4 = vector.broadcast %3 : vector<1x512xf32> to vector<8x512xf32>
    %5 = arith.addf %2, %4 : vector<8x512xf32>
    %cst_5 = arith.constant 0.000000e+00 : f32
    %6 = vector.broadcast %cst_5 : f32 to vector<8x512xf32>
    %7 = arith.maximumf %5, %6 : vector<8x512xf32>
    %8 = arith.truncf %7 : vector<8x512xf32> to vector<8x512xbf16>
    %c0_6 = arith.constant 0 : index
    %c0_7 = arith.constant 0 : index
    %9 = vector.load %arg4[%c0_6, %c0_7] : memref<512x512xbf16, #tpu.memory_space<vmem>>, vector<512x512xbf16>
    %cst_8 = arith.constant dense<0.000000e+00> : vector<8x512xf32>
    %10 = tpu.matmul %8, %9, %cst_8 {dimension_numbers = #tpu.dot_dimension_numbers<[1], [0], [0], [1], [0, 0, 1, 1], [], []>} : vector<8x512xbf16>, vector<512x512xbf16>, vector<8x512xf32> -> vector<8x512xf32>
    %c0_9 = arith.constant 0 : index
    %c0_10 = arith.constant 0 : index
    %11 = vector.load %arg5[%c0_9, %c0_10] : memref<1x512xf32, #tpu.memory_space<vmem>>, vector<1x512xf32>
    %12 = vector.broadcast %11 : vector<1x512xf32> to vector<8x512xf32>
    %13 = arith.addf %10, %12 : vector<8x512xf32>
    %cst_11 = arith.constant 0.000000e+00 : f32
    %14 = vector.broadcast %cst_11 : f32 to vector<8x512xf32>
    %15 = arith.maximumf %13, %14 : vector<8x512xf32>
    %16 = arith.truncf %15 : vector<8x512xf32> to vector<8x512xbf16>
    %c0_12 = arith.constant 0 : index
    %c0_13 = arith.constant 0 : index
    %17 = vector.load %arg6[%c0_12, %c0_13] : memref<512x512xbf16, #tpu.memory_space<vmem>>, vector<512x512xbf16>
    %cst_14 = arith.constant dense<0.000000e+00> : vector<8x512xf32>
    %18 = tpu.matmul %16, %17, %cst_14 {dimension_numbers = #tpu.dot_dimension_numbers<[1], [0], [0], [1], [0, 0, 1, 1], [], []>} : vector<8x512xbf16>, vector<512x512xbf16>, vector<8x512xf32> -> vector<8x512xf32>
    %c0_15 = arith.constant 0 : index
    %c0_16 = arith.constant 0 : index
    %19 = vector.load %arg7[%c0_15, %c0_16] : memref<1x512xf32, #tpu.memory_space<vmem>>, vector<1x512xf32>
    %20 = vector.broadcast %19 : vector<1x512xf32> to vector<8x512xf32>
    %21 = arith.addf %18, %20 : vector<8x512xf32>
    %cst_17 = arith.constant 0.000000e+00 : f32
    %22 = vector.broadcast %cst_17 : f32 to vector<8x512xf32>
    %23 = arith.maximumf %21, %22 : vector<8x512xf32>
    %24 = arith.truncf %23 : vector<8x512xf32> to vector<8x512xbf16>
    %c0_18 = arith.constant 0 : index
    %c0_19 = arith.constant 0 : index
    %25 = vector.load %arg8[%c0_18, %c0_19] : memref<512x256xbf16, #tpu.memory_space<vmem>>, vector<512x256xbf16>
    %cst_20 = arith.constant dense<0.000000e+00> : vector<8x256xf32>
    %26 = tpu.matmul %24, %25, %cst_20 {dimension_numbers = #tpu.dot_dimension_numbers<[1], [0], [0], [1], [0, 0, 1, 1], [], []>} : vector<8x512xbf16>, vector<512x256xbf16>, vector<8x256xf32> -> vector<8x256xf32>
    %c0_21 = arith.constant 0 : index
    %c0_22 = arith.constant 0 : index
    %27 = vector.load %arg9[%c0_21, %c0_22] : memref<1x256xf32, #tpu.memory_space<vmem>>, vector<1x256xf32>
    %28 = vector.broadcast %27 : vector<1x256xf32> to vector<8x256xf32>
    %29 = arith.addf %26, %28 : vector<8x256xf32>
    %cst_23 = arith.constant 0.000000e+00 : f32
    %30 = vector.broadcast %cst_23 : f32 to vector<8x256xf32>
    %31 = arith.maximumf %29, %30 : vector<8x256xf32>
    %32 = arith.truncf %31 : vector<8x256xf32> to vector<8x256xbf16>
    %c0_24 = arith.constant 0 : index
    %c0_25 = arith.constant 0 : index
    %33 = vector.load %arg10[%c0_24, %c0_25] : memref<256x256xbf16, #tpu.memory_space<vmem>>, vector<256x256xbf16>
    %cst_26 = arith.constant dense<0.000000e+00> : vector<8x256xf32>
    %34 = tpu.matmul %32, %33, %cst_26 {dimension_numbers = #tpu.dot_dimension_numbers<[1], [0], [0], [1], [0, 0, 1, 1], [], []>} : vector<8x256xbf16>, vector<256x256xbf16>, vector<8x256xf32> -> vector<8x256xf32>
    %c0_27 = arith.constant 0 : index
    %c0_28 = arith.constant 0 : index
    %35 = vector.load %arg11[%c0_27, %c0_28] : memref<1x256xf32, #tpu.memory_space<vmem>>, vector<1x256xf32>
    %36 = vector.broadcast %35 : vector<1x256xf32> to vector<8x256xf32>
    %37 = arith.addf %34, %36 : vector<8x256xf32>
    %cst_29 = arith.constant 0.000000e+00 : f32
    %38 = vector.broadcast %cst_29 : f32 to vector<8x256xf32>
    %39 = arith.maximumf %37, %38 : vector<8x256xf32>
    %40 = arith.truncf %39 : vector<8x256xf32> to vector<8x256xbf16>
    %c0_30 = arith.constant 0 : index
    %c0_31 = arith.constant 0 : index
    %41 = vector.load %arg12[%c0_30, %c0_31] : memref<256x128xbf16, #tpu.memory_space<vmem>>, vector<256x128xbf16>
    %cst_32 = arith.constant dense<0.000000e+00> : vector<8x128xf32>
    %42 = tpu.matmul %40, %41, %cst_32 {dimension_numbers = #tpu.dot_dimension_numbers<[1], [0], [0], [1], [0, 0, 1, 1], [], []>} : vector<8x256xbf16>, vector<256x128xbf16>, vector<8x128xf32> -> vector<8x128xf32>
    %c0_33 = arith.constant 0 : index
    %c0_34 = arith.constant 0 : index
    %43 = vector.load %arg13[%c0_33, %c0_34] : memref<1x128xf32, #tpu.memory_space<vmem>>, vector<1x128xf32>
    %44 = vector.broadcast %43 : vector<1x128xf32> to vector<8x128xf32>
    %45 = arith.addf %42, %44 : vector<8x128xf32>
    %cst_35 = arith.constant 0.000000e+00 : f32
    %46 = vector.broadcast %cst_35 : f32 to vector<8x128xf32>
    %47 = arith.maximumf %45, %46 : vector<8x128xf32>
    %48 = arith.truncf %47 : vector<8x128xf32> to vector<8x128xbf16>
    %c0_36 = arith.constant 0 : index
    %c0_37 = arith.constant 0 : index
    %49 = vector.load %arg14[%c0_36, %c0_37] : memref<128x128xbf16, #tpu.memory_space<vmem>>, vector<128x128xbf16>
    %cst_38 = arith.constant dense<0.000000e+00> : vector<8x128xf32>
    %50 = tpu.matmul %48, %49, %cst_38 {dimension_numbers = #tpu.dot_dimension_numbers<[1], [0], [0], [1], [0, 0, 1, 1], [], []>} : vector<8x128xbf16>, vector<128x128xbf16>, vector<8x128xf32> -> vector<8x128xf32>
    %c0_39 = arith.constant 0 : index
    %c0_40 = arith.constant 0 : index
    %51 = vector.load %arg15[%c0_39, %c0_40] : memref<1x128xf32, #tpu.memory_space<vmem>>, vector<1x128xf32>
    %52 = vector.broadcast %51 : vector<1x128xf32> to vector<8x128xf32>
    %53 = arith.addf %50, %52 : vector<8x128xf32>
    %c0_41 = arith.constant 0 : index
    %c0_42 = arith.constant 0 : index
    %54 = vector.load %arg16[%c0_41, %c0_42] : memref<8x128xf32, #tpu.memory_space<vmem>>, vector<8x128xf32>
    tpu.vector_store %arg16[%c0_41, %c0_42], %53 {strides = array<i32>} : memref<8x128xf32, #tpu.memory_space<vmem>>, vector<8x128xf32>,
    return
  }
  func.func @transform_0(%arg0: i32) -> (i32, i32) {
    %c0_i32 = arith.constant 0 : i32
    %c0_i32_0 = arith.constant 0 : i32
    return %arg0, %c0_i32 : i32, i32
  }
  func.func @transform_1(%arg0: i32) -> (i32, i32) {
    %c0_i32 = arith.constant 0 : i32
    %c0_i32_0 = arith.constant 0 : i32
    %c0_i32_1 = arith.constant 0 : i32
    return %c0_i32, %c0_i32_0 : i32, i32
  }
  func.func @transform_2(%arg0: i32) -> (i32, i32) {
    %c0_i32 = arith.constant 0 : i32
    %c0_i32_0 = arith.constant 0 : i32
    %c0_i32_1 = arith.constant 0 : i32
    return %c0_i32, %c0_i32_0 : i32, i32
  }
  func.func @transform_3(%arg0: i32) -> (i32, i32) {
    %c0_i32 = arith.constant 0 : i32
    %c0_i32_0 = arith.constant 0 : i32
    %c0_i32_1 = arith.constant 0 : i32
    return %c0_i32, %c0_i32_0 : i32, i32
  }
  func.func @transform_4(%arg0: i32) -> (i32, i32) {
    %c0_i32 = arith.constant 0 : i32
    %c0_i32_0 = arith.constant 0 : i32
    %c0_i32_1 = arith.constant 0 : i32
    return %c0_i32, %c0_i32_0 : i32, i32
  }
  func.func @transform_5(%arg0: i32) -> (i32, i32) {
    %c0_i32 = arith.constant 0 : i32
    %c0_i32_0 = arith.constant 0 : i32
    %c0_i32_1 = arith.constant 0 : i32
    return %c0_i32, %c0_i32_0 : i32, i32
  }
  func.func @transform_6(%arg0: i32) -> (i32, i32) {
    %c0_i32 = arith.constant 0 : i32
    %c0_i32_0 = arith.constant 0 : i32
    %c0_i32_1 = arith.constant 0 : i32
    return %c0_i32, %c0_i32_0 : i32, i32
  }
  func.func @transform_7(%arg0: i32) -> (i32, i32) {
    %c0_i32 = arith.constant 0 : i32
    %c0_i32_0 = arith.constant 0 : i32
    %c0_i32_1 = arith.constant 0 : i32
    return %c0_i32, %c0_i32_0 : i32, i32
  }
  func.func @transform_8(%arg0: i32) -> (i32, i32) {
    %c0_i32 = arith.constant 0 : i32
    %c0_i32_0 = arith.constant 0 : i32
    %c0_i32_1 = arith.constant 0 : i32
    return %c0_i32, %c0_i32_0 : i32, i32
  }
  func.func @transform_9(%arg0: i32) -> (i32, i32) {
    %c0_i32 = arith.constant 0 : i32
    %c0_i32_0 = arith.constant 0 : i32
    %c0_i32_1 = arith.constant 0 : i32
    return %c0_i32, %c0_i32_0 : i32, i32
  }
  func.func @transform_10(%arg0: i32) -> (i32, i32) {
    %c0_i32 = arith.constant 0 : i32
    %c0_i32_0 = arith.constant 0 : i32
    %c0_i32_1 = arith.constant 0 : i32
    return %c0_i32, %c0_i32_0 : i32, i32
  }
  func.func @transform_11(%arg0: i32) -> (i32, i32) {
    %c0_i32 = arith.constant 0 : i32
    %c0_i32_0 = arith.constant 0 : i32
    %c0_i32_1 = arith.constant 0 : i32
    return %c0_i32, %c0_i32_0 : i32, i32
  }
  func.func @transform_12(%arg0: i32) -> (i32, i32) {
    %c0_i32 = arith.constant 0 : i32
    %c0_i32_0 = arith.constant 0 : i32
    %c0_i32_1 = arith.constant 0 : i32
    return %c0_i32, %c0_i32_0 : i32, i32
  }
  func.func @transform_13(%arg0: i32) -> (i32, i32) {
    %c0_i32 = arith.constant 0 : i32
    %c0_i32_0 = arith.constant 0 : i32
    %c0_i32_1 = arith.constant 0 : i32
    return %c0_i32, %c0_i32_0 : i32, i32
  }
  func.func @transform_14(%arg0: i32) -> (i32, i32) {
    %c0_i32 = arith.constant 0 : i32
    %c0_i32_0 = arith.constant 0 : i32
    %c0_i32_1 = arith.constant 0 : i32
    return %c0_i32, %c0_i32_0 : i32, i32
  }
  func.func @transform_15(%arg0: i32) -> (i32, i32) {
    %c0_i32 = arith.constant 0 : i32
    %c0_i32_0 = arith.constant 0 : i32
    return %arg0, %c0_i32 : i32, i32
  }
}

</mosaic_0001>

<llo_original>
// kernel: tpu_custom_call.1
$region0: #{tpu_custom_call.1}
  #allocation0 [shape = 'u32[]', space=smem, size = 0x4, offset = 0x4, fixed_abs, tag = 'smem constant byte address 0x4 - core index']
  #allocation1 [shape = 'u32[144,128]{1,0:T(1,128)}', space=vmem, size = 0x12000, scoped, tag = 'internal scratch']
  %s0 = inlined_call_operand.hbm [shape: bf16[8,128], index: 0, kind: input, shape index: {}]
  %s1 = inlined_call_operand.hbm [shape: bf16[128,512], index: 1, kind: input, shape index: {}]
  %s2 = inlined_call_operand.vmem [shape: f32[1,512], index: 2, kind: input, shape index: {}]
  %s3 = inlined_call_operand.hbm [shape: bf16[512,512], index: 3, kind: input, shape index: {}]
  %s4 = inlined_call_operand.vmem [shape: f32[1,512], index: 4, kind: input, shape index: {}]
  %s5 = inlined_call_operand.hbm [shape: bf16[512,512], index: 5, kind: input, shape index: {}]
  %s6 = inlined_call_operand.vmem [shape: f32[1,512], index: 6, kind: input, shape index: {}]
  %s7 = inlined_call_operand.hbm [shape: bf16[512,256], index: 7, kind: input, shape index: {}]
  %s8 = inlined_call_operand.vmem [shape: f32[1,256], index: 8, kind: input, shape index: {}]
  %s9 = inlined_call_operand.hbm [shape: bf16[256,256], index: 9, kind: input, shape index: {}]
  %s10 = inlined_call_operand.vmem [shape: f32[1,256], index: 10, kind: input, shape index: {}]
  %s11 = inlined_call_operand.hbm [shape: bf16[256,128], index: 11, kind: input, shape index: {}]
  %s12 = inlined_call_operand.vmem [shape: f32[1,128], index: 12, kind: input, shape index: {}]
  %s13 = inlined_call_operand.hbm [shape: bf16[128,128], index: 13, kind: input, shape index: {}]
  %s14 = inlined_call_operand.vmem [shape: f32[1,128], index: 14, kind: input, shape index: {}]
  %s15 = inlined_call_operand.hbm [shape: f32[8,128], index: 15, kind: output, shape index: {}]
  %s16 = sld [smem:[#allocation0]]
  $region102: #{tpu_custom_call.1} parent=0
    _
  %s18 = ssub.s32 1, %s16
  %s19 = scalar_select 0, %s18, %s16
  $region1: #{tpu_custom_call.1} parent=0
    #allocation2 [shape = 'u8[2048]{0}', space=vmem, size = 0x800, scoped, tag = 'input window, operand 0, single buffered']
    #allocation3 [shape = 's32[1]{0}', space=sflag, size = 0x4, scoped, tag = 'scoped memory for tpu_custom_call.1']
    #allocation4 [shape = 's32[1]{0}', space=sflag, size = 0x4, scoped, tag = 'scoped memory for tpu_custom_call.1']
    #allocation5 [shape = 'u8[131072]{0}', space=vmem, size = 0x20000, scoped, tag = 'input window, operand 1, single buffered']
    #allocation6 [shape = 's32[1]{0}', space=sflag, size = 0x4, scoped, tag = 'scoped memory for tpu_custom_call.1']
    #allocation7 [shape = 'u8[524288]{0}', space=vmem, size = 0x80000, scoped, tag = 'input window, operand 3, single buffered']
    #allocation8 [shape = 'u8[524288]{0}', space=vmem, size = 0x80000, scoped, tag = 'input window, operand 5, single buffered']
    #allocation9 [shape = 's32[1]{0}', space=sflag, size = 0x4, scoped, tag = 'scoped memory for tpu_custom_call.1']
    #allocation10 [shape = 'u8[262144]{0}', space=vmem, size = 0x40000, scoped, tag = 'input window, operand 7, single buffered']
    #allocation11 [shape = 'u8[131072]{0}', space=vmem, size = 0x20000, scoped, tag = 'input window, operand 9, single buffered']
    #allocation12 [shape = 's32[1]{0}', space=sflag, size = 0x4, scoped, tag = 'scoped memory for tpu_custom_call.1']
    #allocation13 [shape = 'u8[65536]{0}', space=vmem, size = 0x10000, scoped, tag = 'input window, operand 11, single buffered']
    #allocation14 [shape = 'u8[32768]{0}', space=vmem, size = 0x8000, scoped, tag = 'input window, operand 13, single buffered']
    #allocation15 [shape = 's32[1]{0}', space=sflag, size = 0x4, scoped, tag = 'scoped memory for tpu_custom_call.1']
    #allocation16 [shape = 'u8[4096]{0}', space=vmem, size = 0x1000, scoped, tag = 'output window, operand 0, single buffered']
    %20 = vsyncpa [#allocation3], 0
    %21 = vsyncpa [#allocation6], 0
    %22 = vsyncpa [#allocation9], 0
    %23 = vsyncpa [#allocation12], 0
    %24 = vsyncpa [#allocation15], 0
    %25 = vsyncpa [#allocation4], 0
    // Predicated region
    $region2: #{tpu_custom_call.1} parent=1 // pred_check
      _
    $region3: #{tpu_custom_call.1} parent=1 // pred_check_branch
      %27 = sbr.rel (0) target = $region5
    $region4: #{tpu_custom_call.1} parent=1 // pred_region
      %s29 = ssub.s32 64, 64
      %30 = vsyncadd [#allocation3], %s29
      %s32 = sshll.u32 [#allocation2], 4
      %s33 = int_to_ptr.vmem [resolvable:$true] %s32
      %35 = dma.hbm_to_vmem [thread:$0]  %s0, 64, %s33, [#allocation3]
    $region5: #{tpu_custom_call.1} parent=1 // pred_fallthru
      _
    // Predicated region
    $region6: #{tpu_custom_call.1} parent=1 // pred_check
      _
    $region7: #{tpu_custom_call.1} parent=1 // pred_check_branch
      %37 = sbr.rel (0) target = $region9
    $region8: #{tpu_custom_call.1} parent=1 // pred_region
      %s39 = ssub.s32 4096, 4096
      %40 = vsyncadd [#allocation6], %s39
      %s41 = sshll.u32 [#allocation5], 4
      %s42 = int_to_ptr.vmem [resolvable:$true] %s41
      %47 = dma.hbm_to_vmem [thread:$0]  %s1, 4096, %s42, [#allocation6], 256, 256, 16
    $region9: #{tpu_custom_call.1} parent=1 // pred_fallthru
      _
    // Predicated region
    $region10: #{tpu_custom_call.1} parent=1 // pred_check
      _
    $region11: #{tpu_custom_call.1} parent=1 // pred_check_branch
      %49 = sbr.rel (0) target = $region13
    $region12: #{tpu_custom_call.1} parent=1 // pred_region
      _
    $region13: #{tpu_custom_call.1} parent=1 // pred_fallthru
      _
    // Predicated region
    $region14: #{tpu_custom_call.1} parent=1 // pred_check
      _
    $region15: #{tpu_custom_call.1} parent=1 // pred_check_branch
      %51 = sbr.rel (0) target = $region17
    $region16: #{tpu_custom_call.1} parent=1 // pred_region
      %s53 = ssub.s32 16384, 16384
      %54 = vsyncadd [#allocation6], %s53
      %s55 = sshll.u32 [#allocation7], 4
      %s56 = int_to_ptr.vmem [resolvable:$true] %s55
      %61 = dma.hbm_to_vmem [thread:$0]  %s3, 16384, %s56, [#allocation6], 256, 256, 16
    $region17: #{tpu_custom_call.1} parent=1 // pred_fallthru
      _
    // Predicated region
    $region18: #{tpu_custom_call.1} parent=1 // pred_check
      _
    $region19: #{tpu_custom_call.1} parent=1 // pred_check_branch
      %63 = sbr.rel (0) target = $region21
    $region20: #{tpu_custom_call.1} parent=1 // pred_region
      _
    $region21: #{tpu_custom_call.1} parent=1 // pred_fallthru
      _
    // Predicated region
    $region22: #{tpu_custom_call.1} parent=1 // pred_check
      _
    $region23: #{tpu_custom_call.1} parent=1 // pred_check_branch
      %65 = sbr.rel (0) target = $region25
    $region24: #{tpu_custom_call.1} parent=1 // pred_region
      %s67 = ssub.s32 16384, 16384
      %68 = vsyncadd [#allocation9], %s67
      %s69 = sshll.u32 [#allocation8], 4
      %s70 = int_to_ptr.vmem [resolvable:$true] %s69
      %75 = dma.hbm_to_vmem [thread:$0]  %s5, 16384, %s70, [#allocation9], 256, 256, 16
    $region25: #{tpu_custom_call.1} parent=1 // pred_fallthru
      _
    // Predicated region
    $region26: #{tpu_custom_call.1} parent=1 // pred_check
      _
    $region27: #{tpu_custom_call.1} parent=1 // pred_check_branch
      %77 = sbr.rel (0) target = $region29
    $region28: #{tpu_custom_call.1} parent=1 // pred_region
      _
    $region29: #{tpu_custom_call.1} parent=1 // pred_fallthru
      _
    // Predicated region
    $region30: #{tpu_custom_call.1} parent=1 // pred_check
      _
    $region31: #{tpu_custom_call.1} parent=1 // pred_check_branch
      %79 = sbr.rel (0) target = $region33
    $region32: #{tpu_custom_call.1} parent=1 // pred_region
      %s81 = ssub.s32 8192, 8192
      %82 = vsyncadd [#allocation9], %s81
      %s83 = sshll.u32 [#allocation10], 4
      %s84 = int_to_ptr.vmem [resolvable:$true] %s83
      %89 = dma.hbm_to_vmem [thread:$0]  %s7, 8192, %s84, [#allocation9], 128, 128, 8
    $region33: #{tpu_custom_call.1} parent=1 // pred_fallthru
      _
    // Predicated region
    $region34: #{tpu_custom_call.1} parent=1 // pred_check
      _
    $region35: #{tpu_custom_call.1} parent=1 // pred_check_branch
      %91 = sbr.rel (0) target = $region37
    $region36: #{tpu_custom_call.1} parent=1 // pred_region
      _
    $region37: #{tpu_custom_call.1} parent=1 // pred_fallthru
      _
    // Predicated region
    $region38: #{tpu_custom_call.1} parent=1 // pred_check
      _
    $region39: #{tpu_custom_call.1} parent=1 // pred_check_branch
      %93 = sbr.rel (0) target = $region41
    $region40: #{tpu_custom_call.1} parent=1 // pred_region
      %s95 = ssub.s32 4096, 4096
      %96 = vsyncadd [#allocation12], %s95
      %s97 = sshll.u32 [#allocation11], 4
      %s98 = int_to_ptr.vmem [resolvable:$true] %s97
      %103 = dma.hbm_to_vmem [thread:$0]  %s9, 4096, %s98, [#allocation12], 128, 128, 8
    $region41: #{tpu_custom_call.1} parent=1 // pred_fallthru
      _
    // Predicated region
    $region42: #{tpu_custom_call.1} parent=1 // pred_check
      _
    $region43: #{tpu_custom_call.1} parent=1 // pred_check_branch
      %105 = sbr.rel (0) target = $region45
    $region44: #{tpu_custom_call.1} parent=1 // pred_region
      _
    $region45: #{tpu_custom_call.1} parent=1 // pred_fallthru
      _
    // Predicated region
    $region46: #{tpu_custom_call.1} parent=1 // pred_check
      _
    $region47: #{tpu_custom_call.1} parent=1 // pred_check_branch
      %107 = sbr.rel (0) target = $region49
    $region48: #{tpu_custom_call.1} parent=1 // pred_region
      %s109 = ssub.s32 2048, 2048
      %110 = vsyncadd [#allocation12], %s109
      %s111 = sshll.u32 [#allocation13], 4
      %s112 = int_to_ptr.vmem [resolvable:$true] %s111
      %117 = dma.hbm_to_vmem [thread:$0]  %s11, 2048, %s112, [#allocation12], 64, 64, 4
    $region49: #{tpu_custom_call.1} parent=1 // pred_fallthru
      _
    // Predicated region
    $region50: #{tpu_custom_call.1} parent=1 // pred_check
      _
    $region51: #{tpu_custom_call.1} parent=1 // pred_check_branch
      %119 = sbr.rel (0) target = $region53
    $region52: #{tpu_custom_call.1} parent=1 // pred_region
      _
    $region53: #{tpu_custom_call.1} parent=1 // pred_fallthru
      _
    // Predicated region
    $region54: #{tpu_custom_call.1} parent=1 // pred_check
      _
    $region55: #{tpu_custom_call.1} parent=1 // pred_check_branch
      %121 = sbr.rel (0) target = $region57
    $region56: #{tpu_custom_call.1} parent=1 // pred_region
      %s123 = ssub.s32 1024, 1024
      %124 = vsyncadd [#allocation15], %s123
      %s125 = sshll.u32 [#allocation14], 4
      %s126 = int_to_ptr.vmem [resolvable:$true] %s125
      %131 = dma.hbm_to_vmem [thread:$0]  %s13, 1024, %s126, [#allocation15], 64, 64, 4
    $region57: #{tpu_custom_call.1} parent=1 // pred_fallthru
      _
    // Predicated region
    $region58: #{tpu_custom_call.1} parent=1 // pred_check
      _
    $region59: #{tpu_custom_call.1} parent=1 // pred_check_branch
      %133 = sbr.rel (0) target = $region61
    $region60: #{tpu_custom_call.1} parent=1 // pred_region
      _
    $region61: #{tpu_custom_call.1} parent=1 // pred_fallthru
      _
    // Predicated region
    $region62: #{tpu_custom_call.1} parent=1 // pred_check
      _
    $region63: #{tpu_custom_call.1} parent=1 // pred_check_branch
      %135 = sbr.rel (0) target = $region65
    $region64: #{tpu_custom_call.1} parent=1 // pred_region
      %136 = dma.done [#allocation3], 64
    $region65: #{tpu_custom_call.1} parent=1 // pred_fallthru
      _
    // Predicated region
    $region66: #{tpu_custom_call.1} parent=1 // pred_check
      _
    $region67: #{tpu_custom_call.1} parent=1 // pred_check_branch
      %138 = sbr.rel (0) target = $region69
    $region68: #{tpu_custom_call.1} parent=1 // pred_region
      %139 = dma.done [#allocation6], 4096
    $region69: #{tpu_custom_call.1} parent=1 // pred_fallthru
      _
    // Predicated region
    $region70: #{tpu_custom_call.1} parent=1 // pred_check
      _
    $region71: #{tpu_custom_call.1} parent=1 // pred_check_branch
      %141 = sbr.rel (0) target = $region73
    $region72: #{tpu_custom_call.1} parent=1 // pred_region
      %142 = dma.done [#allocation6], 16384
    $region73: #{tpu_custom_call.1} parent=1 // pred_fallthru
      _
    // Predicated region
    $region74: #{tpu_custom_call.1} parent=1 // pred_check
      _
    $region75: #{tpu_custom_call.1} parent=1 // pred_check_branch
      %144 = sbr.rel (0) target = $region77
    $region76: #{tpu_custom_call.1} parent=1 // pred_region
      %145 = dma.done [#allocation9], 16384
    $region77: #{tpu_custom_call.1} parent=1 // pred_fallthru
      _
    // Predicated region
    $region78: #{tpu_custom_call.1} parent=1 // pred_check
      _
    $region79: #{tpu_custom_call.1} parent=1 // pred_check_branch
      %147 = sbr.rel (0) target = $region81
    $region80: #{tpu_custom_call.1} parent=1 // pred_region
      %148 = dma.done [#allocation9], 8192
    $region81: #{tpu_custom_call.1} parent=1 // pred_fallthru
      _
    // Predicated region
    $region82: #{tpu_custom_call.1} parent=1 // pred_check
      _
    $region83: #{tpu_custom_call.1} parent=1 // pred_check_branch
      %150 = sbr.rel (0) target = $region85
    $region84: #{tpu_custom_call.1} parent=1 // pred_region
      %151 = dma.done [#allocation12], 4096
    $region85: #{tpu_custom_call.1} parent=1 // pred_fallthru
      _
    // Predicated region
    $region86: #{tpu_custom_call.1} parent=1 // pred_check
      _
    $region87: #{tpu_custom_call.1} parent=1 // pred_check_branch
      %153 = sbr.rel (0) target = $region89
    $region88: #{tpu_custom_call.1} parent=1 // pred_region
      %154 = dma.done [#allocation12], 2048
    $region89: #{tpu_custom_call.1} parent=1 // pred_fallthru
      _
    // Predicated region
    $region90: #{tpu_custom_call.1} parent=1 // pred_check
      _
    $region91: #{tpu_custom_call.1} parent=1 // pred_check_branch
      %156 = sbr.rel (0) target = $region93
    $region92: #{tpu_custom_call.1} parent=1 // pred_region
      %157 = dma.done [#allocation15], 1024
    $region93: #{tpu_custom_call.1} parent=1 // pred_fallthru
      _
    %v159 = vld [vmem:[#allocation2] sm:$0xf]
    %v160 = vld [vmem:[#allocation5] sm:$0xff]
    %v161 = vld [vmem:[#allocation5 + $0x8] sm:$0xff]
    %v162 = vld [vmem:[#allocation5 + $0x10] sm:$0xff]
    %v163 = vld [vmem:[#allocation5 + $0x18] sm:$0xff]
    %v164 = vld [vmem:[#allocation5 + $0x20] sm:$0xff]
    %v165 = vld [vmem:[#allocation5 + $0x28] sm:$0xff]
    %v166 = vld [vmem:[#allocation5 + $0x30] sm:$0xff]
    %v167 = vld [vmem:[#allocation5 + $0x38] sm:$0xff]
    %v168 = vld [vmem:[#allocation5 + $0x40] sm:$0xff]
    %v169 = vld [vmem:[#allocation5 + $0x48] sm:$0xff]
    %v170 = vld [vmem:[#allocation5 + $0x50] sm:$0xff]
    %v171 = vld [vmem:[#allocation5 + $0x58] sm:$0xff]
    %v172 = vld [vmem:[#allocation5 + $0x60] sm:$0xff]
    %v173 = vld [vmem:[#allocation5 + $0x68] sm:$0xff]
    %v174 = vld [vmem:[#allocation5 + $0x70] sm:$0xff]
    %v175 = vld [vmem:[#allocation5 + $0x78] sm:$0xff]
    %v176 = vld [vmem:[#allocation5 + $0x80] sm:$0xff]
    %v177 = vld [vmem:[#allocation5 + $0x88] sm:$0xff]
    %v178 = vld [vmem:[#allocation5 + $0x90] sm:$0xff]
    %v179 = vld [vmem:[#allocation5 + $0x98] sm:$0xff]
    %v180 = vld [vmem:[#allocation5 + $0xa0] sm:$0xff]
    %v181 = vld [vmem:[#allocation5 + $0xa8] sm:$0xff]
    %v182 = vld [vmem:[#allocation5 + $0xb0] sm:$0xff]
    %v183 = vld [vmem:[#allocation5 + $0xb8] sm:$0xff]
    %v184 = vld [vmem:[#allocation5 + $0xc0] sm:$0xff]
    %v185 = vld [vmem:[#allocation5 + $0xc8] sm:$0xff]
    %v186 = vld [vmem:[#allocation5 + $0xd0] sm:$0xff]
    %v187 = vld [vmem:[#allocation5 + $0xd8] sm:$0xff]
    %v188 = vld [vmem:[#allocation5 + $0xe0] sm:$0xff]
    %v189 = vld [vmem:[#allocation5 + $0xe8] sm:$0xff]
    %v190 = vld [vmem:[#allocation5 + $0xf0] sm:$0xff]
    %v191 = vld [vmem:[#allocation5 + $0xf8] sm:$0xff]
    %v192 = vld [vmem:[%s2] sm:$0xf]
    %v194 = vlaneseq
    %v195 = vshrl.u32 %v194, 7
    %v196 = vsub.s32 0, %v195
    %v197 = vrot.slane %v192, %v196
    %v198 = vlaneseq
    %v199 = vshrl.u32 %v198, 7
    %v200 = vsub.s32 1, %v199
    %v201 = vrot.slane %v192, %v200
    %v202 = vlaneseq
    %v203 = vshrl.u32 %v202, 7
    %v204 = vsub.s32 2, %v203
    %v205 = vrot.slane %v192, %v204
    %v206 = vlaneseq
    %v207 = vshrl.u32 %v206, 7
    %v208 = vsub.s32 3, %v207
    %v209 = vrot.slane %v192, %v208
    %v246 = vunpack.c.l.b16 %v160
    %v247 = vunpack.c.h.b16 %v160
    %v248 = vunpack.c.l.b16 %v161
    %v249 = vunpack.c.h.b16 %v161
    %v250 = vunpack.c.l.b16 %v162
    %v251 = vunpack.c.h.b16 %v162
    %v252 = vunpack.c.l.b16 %v163
    %v253 = vunpack.c.h.b16 %v163
    %v254 = vunpack.c.l.b16 %v164
    %v255 = vunpack.c.h.b16 %v164
    %v256 = vunpack.c.l.b16 %v165
    %v257 = vunpack.c.h.b16 %v165
    %v258 = vunpack.c.l.b16 %v166
    %v259 = vunpack.c.h.b16 %v166
    %v260 = vunpack.c.l.b16 %v167
    %v261 = vunpack.c.h.b16 %v167
    %v262 = vunpack.c.l.b16 %v168
    %v263 = vunpack.c.h.b16 %v168
    %v264 = vunpack.c.l.b16 %v169
    %v265 = vunpack.c.h.b16 %v169
    %v266 = vunpack.c.l.b16 %v170
    %v267 = vunpack.c.h.b16 %v170
    %v268 = vunpack.c.l.b16 %v171
    %v269 = vunpack.c.h.b16 %v171
    %v270 = vunpack.c.l.b16 %v172
    %v271 = vunpack.c.h.b16 %v172
    %v272 = vunpack.c.l.b16 %v173
    %v273 = vunpack.c.h.b16 %v173
    %v274 = vunpack.c.l.b16 %v174
    %v275 = vunpack.c.h.b16 %v174
    %v276 = vunpack.c.l.b16 %v175
    %v277 = vunpack.c.h.b16 %v175
    %v278 = vunpack.c.l.b16 %v176
    %v279 = vunpack.c.h.b16 %v176
    %v280 = vunpack.c.l.b16 %v177
    %v281 = vunpack.c.h.b16 %v177
    %v282 = vunpack.c.l.b16 %v178
    %v283 = vunpack.c.h.b16 %v178
    %v284 = vunpack.c.l.b16 %v179
    %v285 = vunpack.c.h.b16 %v179
    %v286 = vunpack.c.l.b16 %v180
    %v287 = vunpack.c.h.b16 %v180
    %v288 = vunpack.c.l.b16 %v181
    %v289 = vunpack.c.h.b16 %v181
    %v290 = vunpack.c.l.b16 %v182
    %v291 = vunpack.c.h.b16 %v182
    %v292 = vunpack.c.l.b16 %v183
    %v293 = vunpack.c.h.b16 %v183
    %v294 = vunpack.c.l.b16 %v184
    %v295 = vunpack.c.h.b16 %v184
    %v296 = vunpack.c.l.b16 %v185
    %v297 = vunpack.c.h.b16 %v185
    %v298 = vunpack.c.l.b16 %v186
    %v299 = vunpack.c.h.b16 %v186
    %v300 = vunpack.c.l.b16 %v187
    %v301 = vunpack.c.h.b16 %v187
    %v302 = vunpack.c.l.b16 %v188
    %v303 = vunpack.c.h.b16 %v188
    %v304 = vunpack.c.l.b16 %v189
    %v305 = vunpack.c.h.b16 %v189
    %v306 = vunpack.c.l.b16 %v190
    %v307 = vunpack.c.h.b16 %v190
    %v308 = vunpack.c.l.b16 %v191
    %v309 = vunpack.c.h.b16 %v191
    %v310 = vpack.c.b16 %v250, %v246
    %v311 = vpack.c.b16 %v251, %v247
    %v312 = vpack.c.b16 %v252, %v248
    %v313 = vpack.c.b16 %v253, %v249
    %v314 = vpack.c.b16 %v258, %v254
    %v315 = vpack.c.b16 %v259, %v255
    %v316 = vpack.c.b16 %v260, %v256
    %v317 = vpack.c.b16 %v261, %v257
    %v318 = vpack.c.b16 %v266, %v262
    %v319 = vpack.c.b16 %v267, %v263
    %v320 = vpack.c.b16 %v268, %v264
    %v321 = vpack.c.b16 %v269, %v265
    %v322 = vpack.c.b16 %v274, %v270
    %v323 = vpack.c.b16 %v275, %v271
    %v324 = vpack.c.b16 %v276, %v272
    %v325 = vpack.c.b16 %v277, %v273
    %v326 = vpack.c.b16 %v282, %v278
    %v327 = vpack.c.b16 %v283, %v279
    %v328 = vpack.c.b16 %v284, %v280
    %v329 = vpack.c.b16 %v285, %v281
    %v330 = vpack.c.b16 %v290, %v286
    %v331 = vpack.c.b16 %v291, %v287
    %v332 = vpack.c.b16 %v292, %v288
    %v333 = vpack.c.b16 %v293, %v289
    %v334 = vpack.c.b16 %v298, %v294
    %v335 = vpack.c.b16 %v299, %v295
    %v336 = vpack.c.b16 %v300, %v296
    %v337 = vpack.c.b16 %v301, %v297
    %v338 = vpack.c.b16 %v306, %v302
    %v339 = vpack.c.b16 %v307, %v303
    %v340 = vpack.c.b16 %v308, %v304
    %v341 = vpack.c.b16 %v309, %v305
    %374 = vmatprep.subr.bf16.mxu0 %v311
    %375 = vmatpush1.bf16.msra.mxu0 %v310
    %376 = vmatprep.subr.bf16.mxu0 %v315
    %377 = vmatpush1.bf16.msra.mxu0 %v314
    %378 = vmatprep.subr.bf16.mxu0 %v319
    %379 = vmatpush1.bf16.msra.mxu0 %v318
    %380 = vmatprep.subr.bf16.mxu0 %v323
    %381 = vmatpush1.bf16.msra.mxu0 %v322
    %382 = vmatprep.subr.bf16.mxu0 %v327
    %383 = vmatpush1.bf16.msra.mxu0 %v326
    %384 = vmatprep.subr.bf16.mxu0 %v331
    %385 = vmatpush1.bf16.msra.mxu0 %v330
    %386 = vmatprep.subr.bf16.mxu0 %v335
    %387 = vmatpush1.bf16.msra.mxu0 %v334
    %388 = vmatprep.subr.bf16.mxu0 %v339
    %389 = vmatpush1.bf16.msra.mxu0 %v338
    %390 = vmatprep.subr.bf16.mxu0 0
    %391 = vmatpush1.bf16.msra.mxu0 0
    %392 = vmatprep.subr.bf16.mxu0 0
    %393 = vmatpush1.bf16.msra.mxu0 0
    %394 = vmatprep.subr.bf16.mxu0 0
    %395 = vmatpush1.bf16.msra.mxu0 0
    %396 = vmatprep.subr.bf16.mxu0 0
    %397 = vmatpush1.bf16.msra.mxu0 0
    %398 = vmatprep.subr.bf16.mxu0 0
    %399 = vmatpush1.bf16.msra.mxu0 0
    %400 = vmatprep.subr.bf16.mxu0 0
    %401 = vmatpush1.bf16.msra.mxu0 0
    %402 = vmatprep.subr.bf16.mxu0 0
    %403 = vmatpush1.bf16.msra.mxu0 0
    %404 = vmatprep.subr.bf16.mxu0 0
    %405 = vmatpush1.bf16.msra.mxu0 0
    %406 = vmatprep.mubr.bf16.mxu0 0
    %407 = vmatmul.mubr.bf16.gmra.mrb[0].mxu0 %v159
    %v408 = vpop.f32.mrb[0].mxu0
    %v409 = vadd.f32 %v197, %v408
    %v410 = vpop.f32.mrb[0].mxu0
    %v411 = vadd.f32 %v201, %v410
    %v412 = vpop.f32.mrb[0].mxu0
    %v413 = vpop.f32.mrb[0].mxu0
    %414 = vdwg.mxu0
    %415 = vmatprep.subr.bf16.mxu0 %v313
    %416 = vmatpush1.bf16.msra.mxu0 %v312
    %417 = vmatprep.subr.bf16.mxu0 %v317
    %418 = vmatpush1.bf16.msra.mxu0 %v316
    %419 = vmatprep.subr.bf16.mxu0 %v321
    %420 = vmatpush1.bf16.msra.mxu0 %v320
    %421 = vmatprep.subr.bf16.mxu0 %v325
    %422 = vmatpush1.bf16.msra.mxu0 %v324
    %423 = vmatprep.subr.bf16.mxu0 %v329
    %424 = vmatpush1.bf16.msra.mxu0 %v328
    %425 = vmatprep.subr.bf16.mxu0 %v333
    %426 = vmatpush1.bf16.msra.mxu0 %v332
    %427 = vmatprep.subr.bf16.mxu0 %v337
    %428 = vmatpush1.bf16.msra.mxu0 %v336
    %429 = vmatprep.subr.bf16.mxu0 %v341
    %430 = vmatpush1.bf16.msra.mxu0 %v340
    %431 = vmatprep.subr.bf16.mxu0 0
    %432 = vmatpush1.bf16.msra.mxu0 0
    %433 = vmatprep.subr.bf16.mxu0 0
    %434 = vmatpush1.bf16.msra.mxu0 0
    %435 = vmatprep.subr.bf16.mxu0 0
    %436 = vmatpush1.bf16.msra.mxu0 0
    %437 = vmatprep.subr.bf16.mxu0 0
    %438 = vmatpush1.bf16.msra.mxu0 0
    %439 = vmatprep.subr.bf16.mxu0 0
    %440 = vmatpush1.bf16.msra.mxu0 0
    %441 = vmatprep.subr.bf16.mxu0 0
    %442 = vmatpush1.bf16.msra.mxu0 0
    %443 = vmatprep.subr.bf16.mxu0 0
    %444 = vmatpush1.bf16.msra.mxu0 0
    %445 = vmatprep.subr.bf16.mxu0 0
    %446 = vmatpush1.bf16.msra.mxu0 0
    %447 = vmatprep.mubr.bf16.mxu0 0
    %448 = vmatmul.mubr.bf16.gmra.mrb[0].mxu0 %v159
    %v449 = vpop.f32.mrb[0].mxu0
    %v450 = vadd.f32 %v205, %v449
    %v451 = vpop.f32.mrb[0].mxu0
    %v452 = vadd.f32 %v209, %v451
    %v453 = vpop.f32.mrb[0].mxu0
    %v454 = vpop.f32.mrb[0].mxu0
    %455 = vdwg.mxu0
    %v456 = vmax.f32 %v409, 0.0
    %v457 = vmax.f32 %v411, 0.0
    %v458 = vmax.f32 %v450, 0.0
    %v459 = vmax.f32 %v452, 0.0
    %v460 = vpack.c.bf16 %v456, %v456
    %v461 = vpack.c.bf16 %v457, %v457
    %v462 = vpack.c.bf16 %v458, %v458
    %v463 = vpack.c.bf16 %v459, %v459
    %v464 = vld [vmem:[#allocation7] sm:$0xff]
    %v465 = vld [vmem:[#allocation7 + $0x8] sm:$0xff]
    %v466 = vld [vmem:[#allocation7 + $0x10] sm:$0xff]
    %v467 = vld [vmem:[#allocation7 + $0x18] sm:$0xff]
    %v468 = vld [vmem:[#allocation7 + $0x20] sm:$0xff]
    %v469 = vld [vmem:[#allocation7 + $0x28] sm:$0xff]
    %v470 = vld [vmem:[#allocation7 + $0x30] sm:$0xff]
    %v471 = vld [vmem:[#allocation7 + $0x38] sm:$0xff]
    %v472 = vld [vmem:[#allocation7 + $0x40] sm:$0xff]
    %v473 = vld [vmem:[#allocation7 + $0x48] sm:$0xff]
    %v474 = vld [vmem:[#allocation7 + $0x50] sm:$0xff]
    %v475 = vld [vmem:[#allocation7 + $0x58] sm:$0xff]
    %v476 = vld [vmem:[#allocation7 + $0x60] sm:$0xff]
    %v477 = vld [vmem:[#allocation7 + $0x68] sm:$0xff]
    %v478 = vld [vmem:[#allocation7 + $0x70] sm:$0xff]
    %v479 = vld [vmem:[#allocation7 + $0x78] sm:$0xff]
    %v480 = vld [vmem:[#allocation7 + $0x80] sm:$0xff]
    %v481 = vld [vmem:[#allocation7 + $0x88] sm:$0xff]
    %v482 = vld [vmem:[#allocation7 + $0x90] sm:$0xff]
    %v483 = vld [vmem:[#allocation7 + $0x98] sm:$0xff]
    %v484 = vld [vmem:[#allocation7 + $0xa0] sm:$0xff]
    %v485 = vld [vmem:[#allocation7 + $0xa8] sm:$0xff]
    %v486 = vld [vmem:[#allocation7 + $0xb0] sm:$0xff]
    %v487 = vld [vmem:[#allocation7 + $0xb8] sm:$0xff]
    %v488 = vld [vmem:[#allocation7 + $0xc0] sm:$0xff]
    %v489 = vld [vmem:[#allocation7 + $0xc8] sm:$0xff]
    %v490 = vld [vmem:[#allocation7 + $0xd0] sm:$0xff]
    %v491 = vld [vmem:[#allocation7 + $0xd8] sm:$0xff]
    %v492 = vld [vmem:[#allocation7 + $0xe0] sm:$0xff]
    %v493 = vld [vmem:[#allocation7 + $0xe8] sm:$0xff]
    %v494 = vld [vmem:[#allocation7 + $0xf0] sm:$0xff]
    %v495 = vld [vmem:[#allocation7 + $0xf8] sm:$0xff]
    %v496 = vld [vmem:[#allocation7 + $0x100] sm:$0xff]
    %v497 = vld [vmem:[#allocation7 + $0x108] sm:$0xff]
    %v498 = vld [vmem:[#allocation7 + $0x110] sm:$0xff]
    %v499 = vld [vmem:[#allocation7 + $0x118] sm:$0xff]
    %v500 = vld [vmem:[#allocation7 + $0x120] sm:$0xff]
    %v501 = vld [vmem:[#allocation7 + $0x128] sm:$0xff]
    %v502 = vld [vmem:[#allocation7 + $0x130] sm:$0xff]
    %v503 = vld [vmem:[#allocation7 + $0x138] sm:$0xff]
    %v504 = vld [vmem:[#allocation7 + $0x140] sm:$0xff]
    %v505 = vld [vmem:[#allocation7 + $0x148] sm:$0xff]
    %v506 = vld [vmem:[#allocation7 + $0x150] sm:$0xff]
    %v507 = vld [vmem:[#allocation7 + $0x158] sm:$0xff]
    %v508 = vld [vmem:[#allocation7 + $0x160] sm:$0xff]
    %v509 = vld [vmem:[#allocation7 + $0x168] sm:$0xff]
    %v510 = vld [vmem:[#allocation7 + $0x170] sm:$0xff]
    %v511 = vld [vmem:[#allocation7 + $0x178] sm:$0xff]
    %v512 = vld [vmem:[#allocation7 + $0x180] sm:$0xff]
    %v513 = vld [vmem:[#allocation7 + $0x188] sm:$0xff]
    %v514 = vld [vmem:[#allocation7 + $0x190] sm:$0xff]
    %v515 = vld [vmem:[#allocation7 + $0x198] sm:$0xff]
    %v516 = vld [vmem:[#allocation7 + $0x1a0] sm:$0xff]
    %v517 = vld [vmem:[#allocation7 + $0x1a8] sm:$0xff]
    %v518 = vld [vmem:[#allocation7 + $0x1b0] sm:$0xff]
    %v519 = vld [vmem:[#allocation7 + $0x1b8] sm:$0xff]
    %v520 = vld [vmem:[#allocation7 + $0x1c0] sm:$0xff]
    %v521 = vld [vmem:[#allocation7 + $0x1c8] sm:$0xff]
    %v522 = vld [vmem:[#allocation7 + $0x1d0] sm:$0xff]
    %v523 = vld [vmem:[#allocation7 + $0x1d8] sm:$0xff]
    %v524 = vld [vmem:[#allocation7 + $0x1e0] sm:$0xff]
    %v525 = vld [vmem:[#allocation7 + $0x1e8] sm:$0xff]
    %v526 = vld [vmem:[#allocation7 + $0x1f0] sm:$0xff]
    %v527 = vld [vmem:[#allocation7 + $0x1f8] sm:$0xff]
    %v528 = vld [vmem:[#allocation7 + $0x200] sm:$0xff]
    %v529 = vld [vmem:[#allocation7 + $0x208] sm:$0xff]
    %v530 = vld [vmem:[#allocation7 + $0x210] sm:$0xff]
    %v531 = vld [vmem:[#allocation7 + $0x218] sm:$0xff]
    %v532 = vld [vmem:[#allocation7 + $0x220] sm:$0xff]
    %v533 = vld [vmem:[#allocation7 + $0x228] sm:$0xff]
    %v534 = vld [vmem:[#allocation7 + $0x230] sm:$0xff]
    %v535 = vld [vmem:[#allocation7 + $0x238] sm:$0xff]
    %v536 = vld [vmem:[#allocation7 + $0x240] sm:$0xff]
    %v537 = vld [vmem:[#allocation7 + $0x248] sm:$0xff]
    %v538 = vld [vmem:[#allocation7 + $0x250] sm:$0xff]
    %v539 = vld [vmem:[#allocation7 + $0x258] sm:$0xff]
    %v540 = vld [vmem:[#allocation7 + $0x260] sm:$0xff]
    %v541 = vld [vmem:[#allocation7 + $0x268] sm:$0xff]
    %v542 = vld [vmem:[#allocation7 + $0x270] sm:$0xff]
    %v543 = vld [vmem:[#allocation7 + $0x278] sm:$0xff]
    %v544 = vld [vmem:[#allocation7 + $0x280] sm:$0xff]
    %v545 = vld [vmem:[#allocation7 + $0x288] sm:$0xff]
    %v546 = vld [vmem:[#allocation7 + $0x290] sm:$0xff]
    %v547 = vld [vmem:[#allocation7 + $0x298] sm:$0xff]
    %v548 = vld [vmem:[#allocation7 + $0x2a0] sm:$0xff]
    %v549 = vld [vmem:[#allocation7 + $0x2a8] sm:$0xff]
    %v550 = vld [vmem:[#allocation7 + $0x2b0] sm:$0xff]
    %v551 = vld [vmem:[#allocation7 + $0x2b8] sm:$0xff]
    %v552 = vld [vmem:[#allocation7 + $0x2c0] sm:$0xff]
    %v553 = vld [vmem:[#allocation7 + $0x2c8] sm:$0xff]
    %v554 = vld [vmem:[#allocation7 + $0x2d0] sm:$0xff]
    %v555 = vld [vmem:[#allocation7 + $0x2d8] sm:$0xff]
    %v556 = vld [vmem:[#allocation7 + $0x2e0] sm:$0xff]
    %v557 = vld [vmem:[#allocation7 + $0x2e8] sm:$0xff]
    %v558 = vld [vmem:[#allocation7 + $0x2f0] sm:$0xff]
    %v559 = vld [vmem:[#allocation7 + $0x2f8] sm:$0xff]
    %v560 = vld [vmem:[#allocation7 + $0x300] sm:$0xff]
    %v561 = vld [vmem:[#allocation7 + $0x308] sm:$0xff]
    %v562 = vld [vmem:[#allocation7 + $0x310] sm:$0xff]
    %v563 = vld [vmem:[#allocation7 + $0x318] sm:$0xff]
    %v564 = vld [vmem:[#allocation7 + $0x320] sm:$0xff]
    %v565 = vld [vmem:[#allocation7 + $0x328] sm:$0xff]
    %v566 = vld [vmem:[#allocation7 + $0x330] sm:$0xff]
    %v567 = vld [vmem:[#allocation7 + $0x338] sm:$0xff]
    %v568 = vld [vmem:[#allocation7 + $0x340] sm:$0xff]
    %v569 = vld [vmem:[#allocation7 + $0x348] sm:$0xff]
    %v570 = vld [vmem:[#allocation7 + $0x350] sm:$0xff]
    %v571 = vld [vmem:[#allocation7 + $0x358] sm:$0xff]
    %v572 = vld [vmem:[#allocation7 + $0x360] sm:$0xff]
    %v573 = vld [vmem:[#allocation7 + $0x368] sm:$0xff]
    %v574 = vld [vmem:[#allocation7 + $0x370] sm:$0xff]
    %v575 = vld [vmem:[#allocation7 + $0x378] sm:$0xff]
    %v576 = vld [vmem:[#allocation7 + $0x380] sm:$0xff]
    %v577 = vld [vmem:[#allocation7 + $0x388] sm:$0xff]
    %v578 = vld [vmem:[#allocation7 + $0x390] sm:$0xff]
    %v579 = vld [vmem:[#allocation7 + $0x398] sm:$0xff]
    %v580 = vld [vmem:[#allocation7 + $0x3a0] sm:$0xff]
    %v581 = vld [vmem:[#allocation7 + $0x3a8] sm:$0xff]
    %v582 = vld [vmem:[#allocation7 + $0x3b0] sm:$0xff]
    %v583 = vld [vmem:[#allocation7 + $0x3b8] sm:$0xff]
    %v584 = vld [vmem:[#allocation7 + $0x3c0] sm:$0xff]
    %v585 = vld [vmem:[#allocation7 + $0x3c8] sm:$0xff]
    %v586 = vld [vmem:[#allocation7 + $0x3d0] sm:$0xff]
    %v587 = vld [vmem:[#allocation7 + $0x3d8] sm:$0xff]
    %v588 = vld [vmem:[#allocation7 + $0x3e0] sm:$0xff]
    %v589 = vld [vmem:[#allocation7 + $0x3e8] sm:$0xff]
    %v590 = vld [vmem:[#allocation7 + $0x3f0] sm:$0xff]
    %v591 = vld [vmem:[#allocation7 + $0x3f8] sm:$0xff]
    %v592 = vld [vmem:[%s4] sm:$0xf]
    %v594 = vlaneseq
    %v595 = vshrl.u32 %v594, 7
    %v596 = vsub.s32 0, %v595
    %v597 = vrot.slane %v592, %v596
    %v598 = vlaneseq
    %v599 = vshrl.u32 %v598, 7
    %v600 = vsub.s32 1, %v599
    %v601 = vrot.slane %v592, %v600
    %v602 = vlaneseq
    %v603 = vshrl.u32 %v602, 7
    %v604 = vsub.s32 2, %v603
    %v605 = vrot.slane %v592, %v604
    %v606 = vlaneseq
    %v607 = vshrl.u32 %v606, 7
    %v608 = vsub.s32 3, %v607
    %v609 = vrot.slane %v592, %v608
    %v742 = vunpack.c.l.b16 %v464
    %v743 = vunpack.c.h.b16 %v464
    %v744 = vunpack.c.l.b16 %v465
    %v745 = vunpack.c.h.b16 %v465
    %v746 = vunpack.c.l.b16 %v466
    %v747 = vunpack.c.h.b16 %v466
    %v748 = vunpack.c.l.b16 %v467
    %v749 = vunpack.c.h.b16 %v467
    %v750 = vunpack.c.l.b16 %v468
    %v751 = vunpack.c.h.b16 %v468
    %v752 = vunpack.c.l.b16 %v469
    %v753 = vunpack.c.h.b16 %v469
    %v754 = vunpack.c.l.b16 %v470
    %v755 = vunpack.c.h.b16 %v470
    %v756 = vunpack.c.l.b16 %v471
    %v757 = vunpack.c.h.b16 %v471
    %v758 = vunpack.c.l.b16 %v472
    %v759 = vunpack.c.h.b16 %v472
    %v760 = vunpack.c.l.b16 %v473
    %v761 = vunpack.c.h.b16 %v473
    %v762 = vunpack.c.l.b16 %v474
    %v763 = vunpack.c.h.b16 %v474
    %v764 = vunpack.c.l.b16 %v475
    %v765 = vunpack.c.h.b16 %v475
    %v766 = vunpack.c.l.b16 %v476
    %v767 = vunpack.c.h.b16 %v476
    %v768 = vunpack.c.l.b16 %v477
    %v769 = vunpack.c.h.b16 %v477
    %v770 = vunpack.c.l.b16 %v478
    %v771 = vunpack.c.h.b16 %v478
    %v772 = vunpack.c.l.b16 %v479
    %v773 = vunpack.c.h.b16 %v479
    %v774 = vunpack.c.l.b16 %v480
    %v775 = vunpack.c.h.b16 %v480
    %v776 = vunpack.c.l.b16 %v481
    %v777 = vunpack.c.h.b16 %v481
    %v778 = vunpack.c.l.b16 %v482
    %v779 = vunpack.c.h.b16 %v482
    %v780 = vunpack.c.l.b16 %v483
    %v781 = vunpack.c.h.b16 %v483
    %v782 = vunpack.c.l.b16 %v484
    %v783 = vunpack.c.h.b16 %v484
    %v784 = vunpack.c.l.b16 %v485
    %v785 = vunpack.c.h.b16 %v485
    %v786 = vunpack.c.l.b16 %v486
    %v787 = vunpack.c.h.b16 %v486
    %v788 = vunpack.c.l.b16 %v487
    %v789 = vunpack.c.h.b16 %v487
    %v790 = vunpack.c.l.b16 %v488
    %v791 = vunpack.c.h.b16 %v488
    %v792 = vunpack.c.l.b16 %v489
    %v793 = vunpack.c.h.b16 %v489
    %v794 = vunpack.c.l.b16 %v490
    %v795 = vunpack.c.h.b16 %v490
    %v796 = vunpack.c.l.b16 %v491
    %v797 = vunpack.c.h.b16 %v491
    %v798 = vunpack.c.l.b16 %v492
    %v799 = vunpack.c.h.b16 %v492
    %v800 = vunpack.c.l.b16 %v493
    %v801 = vunpack.c.h.b16 %v493
    %v802 = vunpack.c.l.b16 %v494
    %v803 = vunpack.c.h.b16 %v494
    %v804 = vunpack.c.l.b16 %v495
    %v805 = vunpack.c.h.b16 %v495
    %v806 = vunpack.c.l.b16 %v496
    %v807 = vunpack.c.h.b16 %v496
    %v808 = vunpack.c.l.b16 %v497
    %v809 = vunpack.c.h.b16 %v497
    %v810 = vunpack.c.l.b16 %v498
    %v811 = vunpack.c.h.b16 %v498
    %v812 = vunpack.c.l.b16 %v499
    %v813 = vunpack.c.h.b16 %v499
    %v814 = vunpack.c.l.b16 %v500
    %v815 = vunpack.c.h.b16 %v500
    %v816 = vunpack.c.l.b16 %v501
    %v817 = vunpack.c.h.b16 %v501
    %v818 = vunpack.c.l.b16 %v502
    %v819 = vunpack.c.h.b16 %v502
    %v820 = vunpack.c.l.b16 %v503
    %v821 = vunpack.c.h.b16 %v503
    %v822 = vunpack.c.l.b16 %v504
    %v823 = vunpack.c.h.b16 %v504
    %v824 = vunpack.c.l.b16 %v505
    %v825 = vunpack.c.h.b16 %v505
    %v826 = vunpack.c.l.b16 %v506
    %v827 = vunpack.c.h.b16 %v506
    %v828 = vunpack.c.l.b16 %v507
    %v829 = vunpack.c.h.b16 %v507
    %v830 = vunpack.c.l.b16 %v508
    %v831 = vunpack.c.h.b16 %v508
    %v832 = vunpack.c.l.b16 %v509
    %v833 = vunpack.c.h.b16 %v509
    %v834 = vunpack.c.l.b16 %v510
    %v835 = vunpack.c.h.b16 %v510
    %v836 = vunpack.c.l.b16 %v511
    %v837 = vunpack.c.h.b16 %v511
    %v838 = vunpack.c.l.b16 %v512
    %v839 = vunpack.c.h.b16 %v512
    %v840 = vunpack.c.l.b16 %v513
    %v841 = vunpack.c.h.b16 %v513
    %v842 = vunpack.c.l.b16 %v514
    %v843 = vunpack.c.h.b16 %v514
    %v844 = vunpack.c.l.b16 %v515
    %v845 = vunpack.c.h.b16 %v515
    %v846 = vunpack.c.l.b16 %v516
    %v847 = vunpack.c.h.b16 %v516
    %v848 = vunpack.c.l.b16 %v517
    %v849 = vunpack.c.h.b16 %v517
    %v850 = vunpack.c.l.b16 %v518
    %v851 = vunpack.c.h.b16 %v518
    %v852 = vunpack.c.l.b16 %v519
    %v853 = vunpack.c.h.b16 %v519
    %v854 = vunpack.c.l.b16 %v520
    %v855 = vunpack.c.h.b16 %v520
    %v856 = vunpack.c.l.b16 %v521
    %v857 = vunpack.c.h.b16 %v521
    %v858 = vunpack.c.l.b16 %v522
    %v859 = vunpack.c.h.b16 %v522
    %v860 = vunpack.c.l.b16 %v523
    %v861 = vunpack.c.h.b16 %v523
    %v862 = vunpack.c.l.b16 %v524
    %v863 = vunpack.c.h.b16 %v524
    %v864 = vunpack.c.l.b16 %v525
    %v865 = vunpack.c.h.b16 %v525
    %v866 = vunpack.c.l.b16 %v526
    %v867 = vunpack.c.h.b16 %v526
    %v868 = vunpack.c.l.b16 %v527
    %v869 = vunpack.c.h.b16 %v527
    %v870 = vunpack.c.l.b16 %v528
    %v871 = vunpack.c.h.b16 %v528
    %v872 = vunpack.c.l.b16 %v529
    %v873 = vunpack.c.h.b16 %v529
    %v874 = vunpack.c.l.b16 %v530
    %v875 = vunpack.c.h.b16 %v530
    %v876 = vunpack.c.l.b16 %v531
    %v877 = vunpack.c.h.b16 %v531
    %v878 = vunpack.c.l.b16 %v532
    %v879 = vunpack.c.h.b16 %v532
    %v880 = vunpack.c.l.b16 %v533
    %v881 = vunpack.c.h.b16 %v533
    %v882 = vunpack.c.l.b16 %v534
    %v883 = vunpack.c.h.b16 %v534
    %v884 = vunpack.c.l.b16 %v535
    %v885 = vunpack.c.h.b16 %v535
    %v886 = vunpack.c.l.b16 %v536
    %v887 = vunpack.c.h.b16 %v536
    %v888 = vunpack.c.l.b16 %v537
    %v889 = vunpack.c.h.b16 %v537
    %v890 = vunpack.c.l.b16 %v538
    %v891 = vunpack.c.h.b16 %v538
    %v892 = vunpack.c.l.b16 %v539
    %v893 = vunpack.c.h.b16 %v539
    %v894 = vunpack.c.l.b16 %v540
    %v895 = vunpack.c.h.b16 %v540
    %v896 = vunpack.c.l.b16 %v541
    %v897 = vunpack.c.h.b16 %v541
    %v898 = vunpack.c.l.b16 %v542
    %v899 = vunpack.c.h.b16 %v542
    %v900 = vunpack.c.l.b16 %v543
    %v901 = vunpack.c.h.b16 %v543
    %v902 = vunpack.c.l.b16 %v544
    %v903 = vunpack.c.h.b16 %v544
    %v904 = vunpack.c.l.b16 %v545
    %v905 = vunpack.c.h.b16 %v545
    %v906 = vunpack.c.l.b16 %v546
    %v907 = vunpack.c.h.b16 %v546
    %v908 = vunpack.c.l.b16 %v547
    %v909 = vunpack.c.h.b16 %v547
    %v910 = vunpack.c.l.b16 %v548
    %v911 = vunpack.c.h.b16 %v548
    %v912 = vunpack.c.l.b16 %v549
    %v913 = vunpack.c.h.b16 %v549
    %v914 = vunpack.c.l.b16 %v550
    %v915 = vunpack.c.h.b16 %v550
    %v916 = vunpack.c.l.b16 %v551
    %v917 = vunpack.c.h.b16 %v551
    %v918 = vunpack.c.l.b16 %v552
    %v919 = vunpack.c.h.b16 %v552
    %v920 = vunpack.c.l.b16 %v553
    %v921 = vunpack.c.h.b16 %v553
    %v922 = vunpack.c.l.b16 %v554
    %v923 = vunpack.c.h.b16 %v554
    %v924 = vunpack.c.l.b16 %v555
    %v925 = vunpack.c.h.b16 %v555
    %v926 = vunpack.c.l.b16 %v556
    %v927 = vunpack.c.h.b16 %v556
    %v928 = vunpack.c.l.b16 %v557
    %v929 = vunpack.c.h.b16 %v557
    %v930 = vunpack.c.l.b16 %v558
    %v931 = vunpack.c.h.b16 %v558
    %v932 = vunpack.c.l.b16 %v559
    %v933 = vunpack.c.h.b16 %v559
    %v934 = vunpack.c.l.b16 %v560
    %v935 = vunpack.c.h.b16 %v560
    %v936 = vunpack.c.l.b16 %v561
    %v937 = vunpack.c.h.b16 %v561
    %v938 = vunpack.c.l.b16 %v562
    %v939 = vunpack.c.h.b16 %v562
    %v940 = vunpack.c.l.b16 %v563
    %v941 = vunpack.c.h.b16 %v563
    %v942 = vunpack.c.l.b16 %v564
    %v943 = vunpack.c.h.b16 %v564
    %v944 = vunpack.c.l.b16 %v565
    %v945 = vunpack.c.h.b16 %v565
    %v946 = vunpack.c.l.b16 %v566
    %v947 = vunpack.c.h.b16 %v566
    %v948 = vunpack.c.l.b16 %v567
    %v949 = vunpack.c.h.b16 %v567
    %v950 = vunpack.c.l.b16 %v568
    %v951 = vunpack.c.h.b16 %v568
    %v952 = vunpack.c.l.b16 %v569
    %v953 = vunpack.c.h.b16 %v569
    %v954 = vunpack.c.l.b16 %v570
    %v955 = vunpack.c.h.b16 %v570
    %v956 = vunpack.c.l.b16 %v571
    %v957 = vunpack.c.h.b16 %v571
    %v958 = vunpack.c.l.b16 %v572
    %v959 = vunpack.c.h.b16 %v572
    %v960 = vunpack.c.l.b16 %v573
    %v961 = vunpack.c.h.b16 %v573
    %v962 = vunpack.c.l.b16 %v574
    %v963 = vunpack.c.h.b16 %v574
    %v964 = vunpack.c.l.b16 %v575
    %v965 = vunpack.c.h.b16 %v575
    %v966 = vunpack.c.l.b16 %v576
    %v967 = vunpack.c.h.b16 %v576
    %v968 = vunpack.c.l.b16 %v577
    %v969 = vunpack.c.h.b16 %v577
    %v970 = vunpack.c.l.b16 %v578
    %v971 = vunpack.c.h.b16 %v578
    %v972 = vunpack.c.l.b16 %v579
    %v973 = vunpack.c.h.b16 %v579
    %v974 = vunpack.c.l.b16 %v580
    %v975 = vunpack.c.h.b16 %v580
    %v976 = vunpack.c.l.b16 %v581
    %v977 = vunpack.c.h.b16 %v581
    %v978 = vunpack.c.l.b16 %v582
    %v979 = vunpack.c.h.b16 %v582
    %v980 = vunpack.c.l.b16 %v583
    %v981 = vunpack.c.h.b16 %v583
    %v982 = vunpack.c.l.b16 %v584
    %v983 = vunpack.c.h.b16 %v584
    %v984 = vunpack.c.l.b16 %v585
    %v985 = vunpack.c.h.b16 %v585
    %v986 = vunpack.c.l.b16 %v586
    %v987 = vunpack.c.h.b16 %v586
    %v988 = vunpack.c.l.b16 %v587
    %v989 = vunpack.c.h.b16 %v587
    %v990 = vunpack.c.l.b16 %v588
    %v991 = vunpack.c.h.b16 %v588
    %v992 = vunpack.c.l.b16 %v589
    %v993 = vunpack.c.h.b16 %v589
    %v994 = vunpack.c.l.b16 %v590
    %v995 = vunpack.c.h.b16 %v590
    %v996 = vunpack.c.l.b16 %v591
    %v997 = vunpack.c.h.b16 %v591
    %v998 = vpack.c.b16 %v746, %v742
    %v999 = vpack.c.b16 %v747, %v743
    %v1000 = vpack.c.b16 %v748, %v744
    %v1001 = vpack.c.b16 %v749, %v745
    %v1002 = vpack.c.b16 %v754, %v750
    %v1003 = vpack.c.b16 %v755, %v751
    %v1004 = vpack.c.b16 %v756, %v752
    %v1005 = vpack.c.b16 %v757, %v753
    %v1006 = vpack.c.b16 %v762, %v758
    %v1007 = vpack.c.b16 %v763, %v759
    %v1008 = vpack.c.b16 %v764, %v760
    %v1009 = vpack.c.b16 %v765, %v761
    %v1010 = vpack.c.b16 %v770, %v766
    %v1011 = vpack.c.b16 %v771, %v767
    %v1012 = vpack.c.b16 %v772, %v768
    %v1013 = vpack.c.b16 %v773, %v769
    %v1014 = vpack.c.b16 %v778, %v774
    %v1015 = vpack.c.b16 %v779, %v775
    %v1016 = vpack.c.b16 %v780, %v776
    %v1017 = vpack.c.b16 %v781, %v777
    %v1018 = vpack.c.b16 %v786, %v782
    %v1019 = vpack.c.b16 %v787, %v783
    %v1020 = vpack.c.b16 %v788, %v784
    %v1021 = vpack.c.b16 %v789, %v785
    %v1022 = vpack.c.b16 %v794, %v790
    %v1023 = vpack.c.b16 %v795, %v791
    %v1024 = vpack.c.b16 %v796, %v792
    %v1025 = vpack.c.b16 %v797, %v793
    %v1026 = vpack.c.b16 %v802, %v798
    %v1027 = vpack.c.b16 %v803, %v799
    %v1028 = vpack.c.b16 %v804, %v800
    %v1029 = vpack.c.b16 %v805, %v801
    %v1030 = vpack.c.b16 %v810, %v806
    %v1031 = vpack.c.b16 %v811, %v807
    %v1032 = vpack.c.b16 %v812, %v808
    %v1033 = vpack.c.b16 %v813, %v809
    %v1034 = vpack.c.b16 %v818, %v814
    %v1035 = vpack.c.b16 %v819, %v815
    %v1036 = vpack.c.b16 %v820, %v816
    %v1037 = vpack.c.b16 %v821, %v817
    %v1038 = vpack.c.b16 %v826, %v822
    %v1039 = vpack.c.b16 %v827, %v823
    %v1040 = vpack.c.b16 %v828, %v824
    %v1041 = vpack.c.b16 %v829, %v825
    %v1042 = vpack.c.b16 %v834, %v830
    %v1043 = vpack.c.b16 %v835, %v831
    %v1044 = vpack.c.b16 %v836, %v832
    %v1045 = vpack.c.b16 %v837, %v833
    %v1046 = vpack.c.b16 %v842, %v838
    %v1047 = vpack.c.b16 %v843, %v839
    %v1048 = vpack.c.b16 %v844, %v840
    %v1049 = vpack.c.b16 %v845, %v841
    %v1050 = vpack.c.b16 %v850, %v846
    %v1051 = vpack.c.b16 %v851, %v847
    %v1052 = vpack.c.b16 %v852, %v848
    %v1053 = vpack.c.b16 %v853, %v849
    %v1054 = vpack.c.b16 %v858, %v854
    %v1055 = vpack.c.b16 %v859, %v855
    %v1056 = vpack.c.b16 %v860, %v856
    %v1057 = vpack.c.b16 %v861, %v857
    %v1058 = vpack.c.b16 %v866, %v862
    %v1059 = vpack.c.b16 %v867, %v863
    %v1060 = vpack.c.b16 %v868, %v864
    %v1061 = vpack.c.b16 %v869, %v865
    %v1062 = vpack.c.b16 %v874, %v870
    %v1063 = vpack.c.b16 %v875, %v871
    %v1064 = vpack.c.b16 %v876, %v872
    %v1065 = vpack.c.b16 %v877, %v873
    %v1066 = vpack.c.b16 %v882, %v878
    %v1067 = vpack.c.b16 %v883, %v879
    %v1068 = vpack.c.b16 %v884, %v880
    %v1069 = vpack.c.b16 %v885, %v881
    %v1070 = vpack.c.b16 %v890, %v886
    %v1071 = vpack.c.b16 %v891, %v887
    %v1072 = vpack.c.b16 %v892, %v888
    %v1073 = vpack.c.b16 %v893, %v889
    %v1074 = vpack.c.b16 %v898, %v894
    %v1075 = vpack.c.b16 %v899, %v895
    %v1076 = vpack.c.b16 %v900, %v896
    %v1077 = vpack.c.b16 %v901, %v897
    %v1078 = vpack.c.b16 %v906, %v902
    %v1079 = vpack.c.b16 %v907, %v903
    %v1080 = vpack.c.b16 %v908, %v904
    %v1081 = vpack.c.b16 %v909, %v905
    %v1082 = vpack.c.b16 %v914, %v910
    %v1083 = vpack.c.b16 %v915, %v911
    %v1084 = vpack.c.b16 %v916, %v912
    %v1085 = vpack.c.b16 %v917, %v913
    %v1086 = vpack.c.b16 %v922, %v918
    %v1087 = vpack.c.b16 %v923, %v919
    %v1088 = vpack.c.b16 %v924, %v920
    %v1089 = vpack.c.b16 %v925, %v921
    %v1090 = vpack.c.b16 %v930, %v926
    %v1091 = vpack.c.b16 %v931, %v927
    %v1092 = vpack.c.b16 %v932, %v928
    %v1093 = vpack.c.b16 %v933, %v929
    %v1094 = vpack.c.b16 %v938, %v934
    %v1095 = vpack.c.b16 %v939, %v935
    %v1096 = vpack.c.b16 %v940, %v936
    %v1097 = vpack.c.b16 %v941, %v937
    %v1098 = vpack.c.b16 %v946, %v942
    %v1099 = vpack.c.b16 %v947, %v943
    %v1100 = vpack.c.b16 %v948, %v944
    %v1101 = vpack.c.b16 %v949, %v945
    %v1102 = vpack.c.b16 %v954, %v950
    %v1103 = vpack.c.b16 %v955, %v951
    %v1104 = vpack.c.b16 %v956, %v952
    %v1105 = vpack.c.b16 %v957, %v953
    %v1106 = vpack.c.b16 %v962, %v958
    %v1107 = vpack.c.b16 %v963, %v959
    %v1108 = vpack.c.b16 %v964, %v960
    %v1109 = vpack.c.b16 %v965, %v961
    %v1110 = vpack.c.b16 %v970, %v966
    %v1111 = vpack.c.b16 %v971, %v967
    %v1112 = vpack.c.b16 %v972, %v968
    %v1113 = vpack.c.b16 %v973, %v969
    %v1114 = vpack.c.b16 %v978, %v974
    %v1115 = vpack.c.b16 %v979, %v975
    %v1116 = vpack.c.b16 %v980, %v976
    %v1117 = vpack.c.b16 %v981, %v977
    %v1118 = vpack.c.b16 %v986, %v982
    %v1119 = vpack.c.b16 %v987, %v983
    %v1120 = vpack.c.b16 %v988, %v984
    %v1121 = vpack.c.b16 %v989, %v985
    %v1122 = vpack.c.b16 %v994, %v990
    %v1123 = vpack.c.b16 %v995, %v991
    %v1124 = vpack.c.b16 %v996, %v992
    %v1125 = vpack.c.b16 %v997, %v993
    %1254 = vmatprep.subr.bf16.mxu0 %v999
    %1255 = vmatpush1.bf16.msra.mxu0 %v998
    %1256 = vmatprep.subr.bf16.mxu0 %v1003
    %1257 = vmatpush1.bf16.msra.mxu0 %v1002
    %1258 = vmatprep.subr.bf16.mxu0 %v1007
    %1259 = vmatpush1.bf16.msra.mxu0 %v1006
    %1260 = vmatprep.subr.bf16.mxu0 %v1011
    %1261 = vmatpush1.bf16.msra.mxu0 %v1010
    %1262 = vmatprep.subr.bf16.mxu0 %v1015
    %1263 = vmatpush1.bf16.msra.mxu0 %v1014
    %1264 = vmatprep.subr.bf16.mxu0 %v1019
    %1265 = vmatpush1.bf16.msra.mxu0 %v1018
    %1266 = vmatprep.subr.bf16.mxu0 %v1023
    %1267 = vmatpush1.bf16.msra.mxu0 %v1022
    %1268 = vmatprep.subr.bf16.mxu0 %v1027
    %1269 = vmatpush1.bf16.msra.mxu0 %v1026
    %1270 = vmatprep.subr.bf16.mxu0 %v1031
    %1271 = vmatpush1.bf16.msra.mxu0 %v1030
    %1272 = vmatprep.subr.bf16.mxu0 %v1035
    %1273 = vmatpush1.bf16.msra.mxu0 %v1034
    %1274 = vmatprep.subr.bf16.mxu0 %v1039
    %1275 = vmatpush1.bf16.msra.mxu0 %v1038
    %1276 = vmatprep.subr.bf16.mxu0 %v1043
    %1277 = vmatpush1.bf16.msra.mxu0 %v1042
    %1278 = vmatprep.subr.bf16.mxu0 %v1047
    %1279 = vmatpush1.bf16.msra.mxu0 %v1046
    %1280 = vmatprep.subr.bf16.mxu0 %v1051
    %1281 = vmatpush1.bf16.msra.mxu0 %v1050
    %1282 = vmatprep.subr.bf16.mxu0 %v1055
    %1283 = vmatpush1.bf16.msra.mxu0 %v1054
    %1284 = vmatprep.subr.bf16.mxu0 %v1059
    %1285 = vmatpush1.bf16.msra.mxu0 %v1058
    %1286 = vmatprep.mubr.bf16.mxu0 %v461
    %1287 = vmatmul.mubr.bf16.gmra.mrb[0].mxu0 %v460
    %v1288 = vpop.f32.mrb[0].mxu0
    %v1289 = vadd.f32 %v597, %v1288
    %v1290 = vpop.f32.mrb[0].mxu0
    %v1291 = vadd.f32 %v601, %v1290
    %v1292 = vpop.f32.mrb[0].mxu0
    %v1293 = vpop.f32.mrb[0].mxu0
    %1294 = vdwg.mxu0
    %1295 = vmatprep.subr.bf16.mxu0 %v1063
    %1296 = vmatpush1.bf16.msra.mxu0 %v1062
    %1297 = vmatprep.subr.bf16.mxu0 %v1067
    %1298 = vmatpush1.bf16.msra.mxu0 %v1066
    %1299 = vmatprep.subr.bf16.mxu0 %v1071
    %1300 = vmatpush1.bf16.msra.mxu0 %v1070
    %1301 = vmatprep.subr.bf16.mxu0 %v1075
    %1302 = vmatpush1.bf16.msra.mxu0 %v1074
    %1303 = vmatprep.subr.bf16.mxu0 %v1079
    %1304 = vmatpush1.bf16.msra.mxu0 %v1078
    %1305 = vmatprep.subr.bf16.mxu0 %v1083
    %1306 = vmatpush1.bf16.msra.mxu0 %v1082
    %1307 = vmatprep.subr.bf16.mxu0 %v1087
    %1308 = vmatpush1.bf16.msra.mxu0 %v1086
    %1309 = vmatprep.subr.bf16.mxu0 %v1091
    %1310 = vmatpush1.bf16.msra.mxu0 %v1090
    %1311 = vmatprep.subr.bf16.mxu0 %v1095
    %1312 = vmatpush1.bf16.msra.mxu0 %v1094
    %1313 = vmatprep.subr.bf16.mxu0 %v1099
    %1314 = vmatpush1.bf16.msra.mxu0 %v1098
    %1315 = vmatprep.subr.bf16.mxu0 %v1103
    %1316 = vmatpush1.bf16.msra.mxu0 %v1102
    %1317 = vmatprep.subr.bf16.mxu0 %v1107
    %1318 = vmatpush1.bf16.msra.mxu0 %v1106
    %1319 = vmatprep.subr.bf16.mxu0 %v1111
    %1320 = vmatpush1.bf16.msra.mxu0 %v1110
    %1321 = vmatprep.subr.bf16.mxu0 %v1115
    %1322 = vmatpush1.bf16.msra.mxu0 %v1114
    %1323 = vmatprep.subr.bf16.mxu0 %v1119
    %1324 = vmatpush1.bf16.msra.mxu0 %v1118
    %1325 = vmatprep.subr.bf16.mxu0 %v1123
    %1326 = vmatpush1.bf16.msra.mxu0 %v1122
    %1327 = vmatprep.mubr.bf16.mxu0 %v463
    %1328 = vmatmul.mubr.bf16.gmra.mrb[0].mxu0 %v462
    %v1329 = vpop.f32.mrb[0].mxu0
    %v1330 = vadd.f32 %v1289, %v1329
    %v1331 = vpop.f32.mrb[0].mxu0
    %v1332 = vadd.f32 %v1291, %v1331
    %v1333 = vpop.f32.mrb[0].mxu0
    %v1334 = vpop.f32.mrb[0].mxu0
    %1335 = vdwg.mxu0
    %1336 = vmatprep.subr.bf16.mxu0 %v1001
    %1337 = vmatpush1.bf16.msra.mxu0 %v1000
    %1338 = vmatprep.subr.bf16.mxu0 %v1005
    %1339 = vmatpush1.bf16.msra.mxu0 %v1004
    %1340 = vmatprep.subr.bf16.mxu0 %v1009
    %1341 = vmatpush1.bf16.msra.mxu0 %v1008
    %1342 = vmatprep.subr.bf16.mxu0 %v1013
    %1343 = vmatpush1.bf16.msra.mxu0 %v1012
    %1344 = vmatprep.subr.bf16.mxu0 %v1017
    %1345 = vmatpush1.bf16.msra.mxu0 %v1016
    %1346 = vmatprep.subr.bf16.mxu0 %v1021
    %1347 = vmatpush1.bf16.msra.mxu0 %v1020
    %1348 = vmatprep.subr.bf16.mxu0 %v1025
    %1349 = vmatpush1.bf16.msra.mxu0 %v1024
    %1350 = vmatprep.subr.bf16.mxu0 %v1029
    %1351 = vmatpush1.bf16.msra.mxu0 %v1028
    %1352 = vmatprep.subr.bf16.mxu0 %v1033
    %1353 = vmatpush1.bf16.msra.mxu0 %v1032
    %1354 = vmatprep.subr.bf16.mxu0 %v1037
    %1355 = vmatpush1.bf16.msra.mxu0 %v1036
    %1356 = vmatprep.subr.bf16.mxu0 %v1041
    %1357 = vmatpush1.bf16.msra.mxu0 %v1040
    %1358 = vmatprep.subr.bf16.mxu0 %v1045
    %1359 = vmatpush1.bf16.msra.mxu0 %v1044
    %1360 = vmatprep.subr.bf16.mxu0 %v1049
    %1361 = vmatpush1.bf16.msra.mxu0 %v1048
    %1362 = vmatprep.subr.bf16.mxu0 %v1053
    %1363 = vmatpush1.bf16.msra.mxu0 %v1052
    %1364 = vmatprep.subr.bf16.mxu0 %v1057
    %1365 = vmatpush1.bf16.msra.mxu0 %v1056
    %1366 = vmatprep.subr.bf16.mxu0 %v1061
    %1367 = vmatpush1.bf16.msra.mxu0 %v1060
    %1368 = vmatprep.mubr.bf16.mxu0 %v461
    %1369 = vmatmul.mubr.bf16.gmra.mrb[0].mxu0 %v460
    %v1370 = vpop.f32.mrb[0].mxu0
    %v1371 = vadd.f32 %v605, %v1370
    %v1372 = vpop.f32.mrb[0].mxu0
    %v1373 = vadd.f32 %v609, %v1372
    %v1374 = vpop.f32.mrb[0].mxu0
    %v1375 = vpop.f32.mrb[0].mxu0
    %1376 = vdwg.mxu0
    %1377 = vmatprep.subr.bf16.mxu0 %v1065
    %1378 = vmatpush1.bf16.msra.mxu0 %v1064
    %1379 = vmatprep.subr.bf16.mxu0 %v1069
    %1380 = vmatpush1.bf16.msra.mxu0 %v1068
    %1381 = vmatprep.subr.bf16.mxu0 %v1073
    %1382 = vmatpush1.bf16.msra.mxu0 %v1072
    %1383 = vmatprep.subr.bf16.mxu0 %v1077
    %1384 = vmatpush1.bf16.msra.mxu0 %v1076
    %1385 = vmatprep.subr.bf16.mxu0 %v1081
    %1386 = vmatpush1.bf16.msra.mxu0 %v1080
    %1387 = vmatprep.subr.bf16.mxu0 %v1085
    %1388 = vmatpush1.bf16.msra.mxu0 %v1084
    %1389 = vmatprep.subr.bf16.mxu0 %v1089
    %1390 = vmatpush1.bf16.msra.mxu0 %v1088
    %1391 = vmatprep.subr.bf16.mxu0 %v1093
    %1392 = vmatpush1.bf16.msra.mxu0 %v1092
    %1393 = vmatprep.subr.bf16.mxu0 %v1097
    %1394 = vmatpush1.bf16.msra.mxu0 %v1096
    %1395 = vmatprep.subr.bf16.mxu0 %v1101
    %1396 = vmatpush1.bf16.msra.mxu0 %v1100
    %1397 = vmatprep.subr.bf16.mxu0 %v1105
    %1398 = vmatpush1.bf16.msra.mxu0 %v1104
    %1399 = vmatprep.subr.bf16.mxu0 %v1109
    %1400 = vmatpush1.bf16.msra.mxu0 %v1108
    %1401 = vmatprep.subr.bf16.mxu0 %v1113
    %1402 = vmatpush1.bf16.msra.mxu0 %v1112
    %1403 = vmatprep.subr.bf16.mxu0 %v1117
    %1404 = vmatpush1.bf16.msra.mxu0 %v1116
    %1405 = vmatprep.subr.bf16.mxu0 %v1121
    %1406 = vmatpush1.bf16.msra.mxu0 %v1120
    %1407 = vmatprep.subr.bf16.mxu0 %v1125
    %1408 = vmatpush1.bf16.msra.mxu0 %v1124
    %1409 = vmatprep.mubr.bf16.mxu0 %v463
    %1410 = vmatmul.mubr.bf16.gmra.mrb[0].mxu0 %v462
    %v1411 = vpop.f32.mrb[0].mxu0
    %v1412 = vadd.f32 %v1371, %v1411
    %v1413 = vpop.f32.mrb[0].mxu0
    %v1414 = vadd.f32 %v1373, %v1413
    %v1415 = vpop.f32.mrb[0].mxu0
    %v1416 = vpop.f32.mrb[0].mxu0
    %1417 = vdwg.mxu0
    %v1418 = vmax.f32 %v1330, 0.0
    %v1419 = vmax.f32 %v1332, 0.0
    %v1420 = vmax.f32 %v1412, 0.0
    %v1421 = vmax.f32 %v1414, 0.0
    %v1422 = vpack.c.bf16 %v1418, %v1418
    %v1423 = vpack.c.bf16 %v1419, %v1419
    %v1424 = vpack.c.bf16 %v1420, %v1420
    %v1425 = vpack.c.bf16 %v1421, %v1421
    %v1426 = vld [vmem:[#allocation8] sm:$0xff]
    %v1427 = vld [vmem:[#allocation8 + $0x8] sm:$0xff]
    %v1428 = vld [vmem:[#allocation8 + $0x10] sm:$0xff]
    %v1429 = vld [vmem:[#allocation8 + $0x18] sm:$0xff]
    %v1430 = vld [vmem:[#allocation8 + $0x20] sm:$0xff]
    %v1431 = vld [vmem:[#allocation8 + $0x28] sm:$0xff]
    %v1432 = vld [vmem:[#allocation8 + $0x30] sm:$0xff]
    %v1433 = vld [vmem:[#allocation8 + $0x38] sm:$0xff]
    %v1434 = vld [vmem:[#allocation8 + $0x40] sm:$0xff]
    %v1435 = vld [vmem:[#allocation8 + $0x48] sm:$0xff]
    %v1436 = vld [vmem:[#allocation8 + $0x50] sm:$0xff]
    %v1437 = vld [vmem:[#allocation8 + $0x58] sm:$0xff]
    %v1438 = vld [vmem:[#allocation8 + $0x60] sm:$0xff]
    %v1439 = vld [vmem:[#allocation8 + $0x68] sm:$0xff]
    %v1440 = vld [vmem:[#allocation8 + $0x70] sm:$0xff]
    %v1441 = vld [vmem:[#allocation8 + $0x78] sm:$0xff]
    %v1442 = vld [vmem:[#allocation8 + $0x80] sm:$0xff]
    %v1443 = vld [vmem:[#allocation8 + $0x88] sm:$0xff]
    %v1444 = vld [vmem:[#allocation8 + $0x90] sm:$0xff]
    %v1445 = vld [vmem:[#allocation8 + $0x98] sm:$0xff]
    %v1446 = vld [vmem:[#allocation8 + $0xa0] sm:$0xff]
    %v1447 = vld [vmem:[#allocation8 + $0xa8] sm:$0xff]
    %v1448 = vld [vmem:[#allocation8 + $0xb0] sm:$0xff]
    %v1449 = vld [vmem:[#allocation8 + $0xb8] sm:$0xff]
    %v1450 = vld [vmem:[#allocation8 + $0xc0] sm:$0xff]
    %v1451 = vld [vmem:[#allocation8 + $0xc8] sm:$0xff]
    %v1452 = vld [vmem:[#allocation8 + $0xd0] sm:$0xff]
    %v1453 = vld [vmem:[#allocation8 + $0xd8] sm:$0xff]
    %v1454 = vld [vmem:[#allocation8 + $0xe0] sm:$0xff]
    %v1455 = vld [vmem:[#allocation8 + $0xe8] sm:$0xff]
    %v1456 = vld [vmem:[#allocation8 + $0xf0] sm:$0xff]
    %v1457 = vld [vmem:[#allocation8 + $0xf8] sm:$0xff]
    %v1458 = vld [vmem:[#allocation8 + $0x100] sm:$0xff]
    %v1459 = vld [vmem:[#allocation8 + $0x108] sm:$0xff]
    %v1460 = vld [vmem:[#allocation8 + $0x110] sm:$0xff]
    %v1461 = vld [vmem:[#allocation8 + $0x118] sm:$0xff]
    %v1462 = vld [vmem:[#allocation8 + $0x120] sm:$0xff]
    %v1463 = vld [vmem:[#allocation8 + $0x128] sm:$0xff]
    %v1464 = vld [vmem:[#allocation8 + $0x130] sm:$0xff]
    %v1465 = vld [vmem:[#allocation8 + $0x138] sm:$0xff]
    %v1466 = vld [vmem:[#allocation8 + $0x140] sm:$0xff]
    %v1467 = vld [vmem:[#allocation8 + $0x148] sm:$0xff]
    %v1468 = vld [vmem:[#allocation8 + $0x150] sm:$0xff]
    %v1469 = vld [vmem:[#allocation8 + $0x158] sm:$0xff]
    %v1470 = vld [vmem:[#allocation8 + $0x160] sm:$0xff]
    %v1471 = vld [vmem:[#allocation8 + $0x168] sm:$0xff]
    %v1472 = vld [vmem:[#allocation8 + $0x170] sm:$0xff]
    %v1473 = vld [vmem:[#allocation8 + $0x178] sm:$0xff]
    %v1474 = vld [vmem:[#allocation8 + $0x180] sm:$0xff]
    %v1475 = vld [vmem:[#allocation8 + $0x188] sm:$0xff]
    %v1476 = vld [vmem:[#allocation8 + $0x190] sm:$0xff]
    %v1477 = vld [vmem:[#allocation8 + $0x198] sm:$0xff]
    %v1478 = vld [vmem:[#allocation8 + $0x1a0] sm:$0xff]
    %v1479 = vld [vmem:[#allocation8 + $0x1a8] sm:$0xff]
    %v1480 = vld [vmem:[#allocation8 + $0x1b0] sm:$0xff]
    %v1481 = vld [vmem:[#allocation8 + $0x1b8] sm:$0xff]
    %v1482 = vld [vmem:[#allocation8 + $0x1c0] sm:$0xff]
    %v1483 = vld [vmem:[#allocation8 + $0x1c8] sm:$0xff]
    %v1484 = vld [vmem:[#allocation8 + $0x1d0] sm:$0xff]
    %v1485 = vld [vmem:[#allocation8 + $0x1d8] sm:$0xff]
    %v1486 = vld [vmem:[#allocation8 + $0x1e0] sm:$0xff]
    %v1487 = vld [vmem:[#allocation8 + $0x1e8] sm:$0xff]
    %v1488 = vld [vmem:[#allocation8 + $0x1f0] sm:$0xff]
    %v1489 = vld [vmem:[#allocation8 + $0x1f8] sm:$0xff]
    %v1490 = vld [vmem:[#allocation8 + $0x200] sm:$0xff]
    %v1491 = vld [vmem:[#allocation8 + $0x208] sm:$0xff]
    %v1492 = vld [vmem:[#allocation8 + $0x210] sm:$0xff]
    %v1493 = vld [vmem:[#allocation8 + $0x218] sm:$0xff]
    %v1494 = vld [vmem:[#allocation8 + $0x220] sm:$0xff]
    %v1495 = vld [vmem:[#allocation8 + $0x228] sm:$0xff]
    %v1496 = vld [vmem:[#allocation8 + $0x230] sm:$0xff]
    %v1497 = vld [vmem:[#allocation8 + $0x238] sm:$0xff]
    %v1498 = vld [vmem:[#allocation8 + $0x240] sm:$0xff]
    %v1499 = vld [vmem:[#allocation8 + $0x248] sm:$0xff]
    %v1500 = vld [vmem:[#allocation8 + $0x250] sm:$0xff]
    %v1501 = vld [vmem:[#allocation8 + $0x258] sm:$0xff]
    %v1502 = vld [vmem:[#allocation8 + $0x260] sm:$0xff]
    %v1503 = vld [vmem:[#allocation8 + $0x268] sm:$0xff]
    %v1504 = vld [vmem:[#allocation8 + $0x270] sm:$0xff]
    %v1505 = vld [vmem:[#allocation8 + $0x278] sm:$0xff]
    %v1506 = vld [vmem:[#allocation8 + $0x280] sm:$0xff]
    %v1507 = vld [vmem:[#allocation8 + $0x288] sm:$0xff]
    %v1508 = vld [vmem:[#allocation8 + $0x290] sm:$0xff]
    %v1509 = vld [vmem:[#allocation8 + $0x298] sm:$0xff]
    %v1510 = vld [vmem:[#allocation8 + $0x2a0] sm:$0xff]
    %v1511 = vld [vmem:[#allocation8 + $0x2a8] sm:$0xff]
    %v1512 = vld [vmem:[#allocation8 + $0x2b0] sm:$0xff]
    %v1513 = vld [vmem:[#allocation8 + $0x2b8] sm:$0xff]
    %v1514 = vld [vmem:[#allocation8 + $0x2c0] sm:$0xff]
    %v1515 = vld [vmem:[#allocation8 + $0x2c8] sm:$0xff]
    %v1516 = vld [vmem:[#allocation8 + $0x2d0] sm:$0xff]
    %v1517 = vld [vmem:[#allocation8 + $0x2d8] sm:$0xff]
    %v1518 = vld [vmem:[#allocation8 + $0x2e0] sm:$0xff]
    %v1519 = vld [vmem:[#allocation8 + $0x2e8] sm:$0xff]
    %v1520 = vld [vmem:[#allocation8 + $0x2f0] sm:$0xff]
    %v1521 = vld [vmem:[#allocation8 + $0x2f8] sm:$0xff]
    %v1522 = vld [vmem:[#allocation8 + $0x300] sm:$0xff]
    %v1523 = vld [vmem:[#allocation8 + $0x308] sm:$0xff]
    %v1524 = vld [vmem:[#allocation8 + $0x310] sm:$0xff]
    %v1525 = vld [vmem:[#allocation8 + $0x318] sm:$0xff]
    %v1526 = vld [vmem:[#allocation8 + $0x320] sm:$0xff]
    %v1527 = vld [vmem:[#allocation8 + $0x328] sm:$0xff]
    %v1528 = vld [vmem:[#allocation8 + $0x330] sm:$0xff]
    %v1529 = vld [vmem:[#allocation8 + $0x338] sm:$0xff]
    %v1530 = vld [vmem:[#allocation8 + $0x340] sm:$0xff]
    %v1531 = vld [vmem:[#allocation8 + $0x348] sm:$0xff]
    %v1532 = vld [vmem:[#allocation8 + $0x350] sm:$0xff]
    %v1533 = vld [vmem:[#allocation8 + $0x358] sm:$0xff]
    %v1534 = vld [vmem:[#allocation8 + $0x360] sm:$0xff]
    %v1535 = vld [vmem:[#allocation8 + $0x368] sm:$0xff]
    %v1536 = vld [vmem:[#allocation8 + $0x370] sm:$0xff]
    %v1537 = vld [vmem:[#allocation8 + $0x378] sm:$0xff]
    %v1538 = vld [vmem:[#allocation8 + $0x380] sm:$0xff]
    %v1539 = vld [vmem:[#allocation8 + $0x388] sm:$0xff]
    %v1540 = vld [vmem:[#allocation8 + $0x390] sm:$0xff]
    %v1541 = vld [vmem:[#allocation8 + $0x398] sm:$0xff]
    %v1542 = vld [vmem:[#allocation8 + $0x3a0] sm:$0xff]
    %v1543 = vld [vmem:[#allocation8 + $0x3a8] sm:$0xff]
    %v1544 = vld [vmem:[#allocation8 + $0x3b0] sm:$0xff]
    %v1545 = vld [vmem:[#allocation8 + $0x3b8] sm:$0xff]
    %v1546 = vld [vmem:[#allocation8 + $0x3c0] sm:$0xff]
    %v1547 = vld [vmem:[#allocation8 + $0x3c8] sm:$0xff]
    %v1548 = vld [vmem:[#allocation8 + $0x3d0] sm:$0xff]
    %v1549 = vld [vmem:[#allocation8 + $0x3d8] sm:$0xff]
    %v1550 = vld [vmem:[#allocation8 + $0x3e0] sm:$0xff]
    %v1551 = vld [vmem:[#allocation8 + $0x3e8] sm:$0xff]
    %v1552 = vld [vmem:[#allocation8 + $0x3f0] sm:$0xff]
    %v1553 = vld [vmem:[#allocation8 + $0x3f8] sm:$0xff]
    %v1554 = vld [vmem:[%s6] sm:$0xf]
    %v1556 = vlaneseq
    %v1557 = vshrl.u32 %v1556, 7
    %v1558 = vsub.s32 0, %v1557
    %v1559 = vrot.slane %v1554, %v1558
    %v1560 = vlaneseq
    %v1561 = vshrl.u32 %v1560, 7
    %v1562 = vsub.s32 1, %v1561
    %v1563 = vrot.slane %v1554, %v1562
    %v1564 = vlaneseq
    %v1565 = vshrl.u32 %v1564, 7
    %v1566 = vsub.s32 2, %v1565
    %v1567 = vrot.slane %v1554, %v1566
    %v1568 = vlaneseq
    %v1569 = vshrl.u32 %v1568, 7
    %v1570 = vsub.s32 3, %v1569
    %v1571 = vrot.slane %v1554, %v1570
    %v1704 = vunpack.c.l.b16 %v1426
    %v1705 = vunpack.c.h.b16 %v1426
    %v1706 = vunpack.c.l.b16 %v1427
    %v1707 = vunpack.c.h.b16 %v1427
    %v1708 = vunpack.c.l.b16 %v1428
    %v1709 = vunpack.c.h.b16 %v1428
    %v1710 = vunpack.c.l.b16 %v1429
    %v1711 = vunpack.c.h.b16 %v1429
    %v1712 = vunpack.c.l.b16 %v1430
    %v1713 = vunpack.c.h.b16 %v1430
    %v1714 = vunpack.c.l.b16 %v1431
    %v1715 = vunpack.c.h.b16 %v1431
    %v1716 = vunpack.c.l.b16 %v1432
    %v1717 = vunpack.c.h.b16 %v1432
    %v1718 = vunpack.c.l.b16 %v1433
    %v1719 = vunpack.c.h.b16 %v1433
    %v1720 = vunpack.c.l.b16 %v1434
    %v1721 = vunpack.c.h.b16 %v1434
    %v1722 = vunpack.c.l.b16 %v1435
    %v1723 = vunpack.c.h.b16 %v1435
    %v1724 = vunpack.c.l.b16 %v1436
    %v1725 = vunpack.c.h.b16 %v1436
    %v1726 = vunpack.c.l.b16 %v1437
    %v1727 = vunpack.c.h.b16 %v1437
    %v1728 = vunpack.c.l.b16 %v1438
    %v1729 = vunpack.c.h.b16 %v1438
    %v1730 = vunpack.c.l.b16 %v1439
    %v1731 = vunpack.c.h.b16 %v1439
    %v1732 = vunpack.c.l.b16 %v1440
    %v1733 = vunpack.c.h.b16 %v1440
    %v1734 = vunpack.c.l.b16 %v1441
    %v1735 = vunpack.c.h.b16 %v1441
    %v1736 = vunpack.c.l.b16 %v1442
    %v1737 = vunpack.c.h.b16 %v1442
    %v1738 = vunpack.c.l.b16 %v1443
    %v1739 = vunpack.c.h.b16 %v1443
    %v1740 = vunpack.c.l.b16 %v1444
    %v1741 = vunpack.c.h.b16 %v1444
    %v1742 = vunpack.c.l.b16 %v1445
    %v1743 = vunpack.c.h.b16 %v1445
    %v1744 = vunpack.c.l.b16 %v1446
    %v1745 = vunpack.c.h.b16 %v1446
    %v1746 = vunpack.c.l.b16 %v1447
    %v1747 = vunpack.c.h.b16 %v1447
    %v1748 = vunpack.c.l.b16 %v1448
    %v1749 = vunpack.c.h.b16 %v1448
    %v1750 = vunpack.c.l.b16 %v1449
    %v1751 = vunpack.c.h.b16 %v1449
    %v1752 = vunpack.c.l.b16 %v1450
    %v1753 = vunpack.c.h.b16 %v1450
    %v1754 = vunpack.c.l.b16 %v1451
    %v1755 = vunpack.c.h.b16 %v1451
    %v1756 = vunpack.c.l.b16 %v1452
    %v1757 = vunpack.c.h.b16 %v1452
    %v1758 = vunpack.c.l.b16 %v1453
    %v1759 = vunpack.c.h.b16 %v1453
    %v1760 = vunpack.c.l.b16 %v1454
    %v1761 = vunpack.c.h.b16 %v1454
    %v1762 = vunpack.c.l.b16 %v1455
    %v1763 = vunpack.c.h.b16 %v1455
    %v1764 = vunpack.c.l.b16 %v1456
    %v1765 = vunpack.c.h.b16 %v1456
    %v1766 = vunpack.c.l.b16 %v1457
    %v1767 = vunpack.c.h.b16 %v1457
    %v1768 = vunpack.c.l.b16 %v1458
    %v1769 = vunpack.c.h.b16 %v1458
    %v1770 = vunpack.c.l.b16 %v1459
    %v1771 = vunpack.c.h.b16 %v1459
    %v1772 = vunpack.c.l.b16 %v1460
    %v1773 = vunpack.c.h.b16 %v1460
    %v1774 = vunpack.c.l.b16 %v1461
    %v1775 = vunpack.c.h.b16 %v1461
    %v1776 = vunpack.c.l.b16 %v1462
    %v1777 = vunpack.c.h.b16 %v1462
    %v1778 = vunpack.c.l.b16 %v1463
    %v1779 = vunpack.c.h.b16 %v1463
    %v1780 = vunpack.c.l.b16 %v1464
    %v1781 = vunpack.c.h.b16 %v1464
    %v1782 = vunpack.c.l.b16 %v1465
    %v1783 = vunpack.c.h.b16 %v1465
    %v1784 = vunpack.c.l.b16 %v1466
    %v1785 = vunpack.c.h.b16 %v1466
    %v1786 = vunpack.c.l.b16 %v1467
    %v1787 = vunpack.c.h.b16 %v1467
    %v1788 = vunpack.c.l.b16 %v1468
    %v1789 = vunpack.c.h.b16 %v1468
    %v1790 = vunpack.c.l.b16 %v1469
    %v1791 = vunpack.c.h.b16 %v1469
    %v1792 = vunpack.c.l.b16 %v1470
    %v1793 = vunpack.c.h.b16 %v1470
    %v1794 = vunpack.c.l.b16 %v1471
    %v1795 = vunpack.c.h.b16 %v1471
    %v1796 = vunpack.c.l.b16 %v1472
    %v1797 = vunpack.c.h.b16 %v1472
    %v1798 = vunpack.c.l.b16 %v1473
    %v1799 = vunpack.c.h.b16 %v1473
    %v1800 = vunpack.c.l.b16 %v1474
    %v1801 = vunpack.c.h.b16 %v1474
    %v1802 = vunpack.c.l.b16 %v1475
    %v1803 = vunpack.c.h.b16 %v1475
    %v1804 = vunpack.c.l.b16 %v1476
    %v1805 = vunpack.c.h.b16 %v1476
    %v1806 = vunpack.c.l.b16 %v1477
    %v1807 = vunpack.c.h.b16 %v1477
    %v1808 = vunpack.c.l.b16 %v1478
    %v1809 = vunpack.c.h.b16 %v1478
    %v1810 = vunpack.c.l.b16 %v1479
    %v1811 = vunpack.c.h.b16 %v1479
    %v1812 = vunpack.c.l.b16 %v1480
    %v1813 = vunpack.c.h.b16 %v1480
    %v1814 = vunpack.c.l.b16 %v1481
    %v1815 = vunpack.c.h.b16 %v1481
    %v1816 = vunpack.c.l.b16 %v1482
    %v1817 = vunpack.c.h.b16 %v1482
    %v1818 = vunpack.c.l.b16 %v1483
    %v1819 = vunpack.c.h.b16 %v1483
    %v1820 = vunpack.c.l.b16 %v1484
    %v1821 = vunpack.c.h.b16 %v1484
    %v1822 = vunpack.c.l.b16 %v1485
    %v1823 = vunpack.c.h.b16 %v1485
    %v1824 = vunpack.c.l.b16 %v1486
    %v1825 = vunpack.c.h.b16 %v1486
    %v1826 = vunpack.c.l.b16 %v1487
    %v1827 = vunpack.c.h.b16 %v1487
    %v1828 = vunpack.c.l.b16 %v1488
    %v1829 = vunpack.c.h.b16 %v1488
    %v1830 = vunpack.c.l.b16 %v1489
    %v1831 = vunpack.c.h.b16 %v1489
    %v1832 = vunpack.c.l.b16 %v1490
    %v1833 = vunpack.c.h.b16 %v1490
    %v1834 = vunpack.c.l.b16 %v1491
    %v1835 = vunpack.c.h.b16 %v1491
    %v1836 = vunpack.c.l.b16 %v1492
    %v1837 = vunpack.c.h.b16 %v1492
    %v1838 = vunpack.c.l.b16 %v1493
    %v1839 = vunpack.c.h.b16 %v1493
    %v1840 = vunpack.c.l.b16 %v1494
    %v1841 = vunpack.c.h.b16 %v1494
    %v1842 = vunpack.c.l.b16 %v1495
    %v1843 = vunpack.c.h.b16 %v1495
    %v1844 = vunpack.c.l.b16 %v1496
    %v1845 = vunpack.c.h.b16 %v1496
    %v1846 = vunpack.c.l.b16 %v1497
    %v1847 = vunpack.c.h.b16 %v1497
    %v1848 = vunpack.c.l.b16 %v1498
    %v1849 = vunpack.c.h.b16 %v1498
    %v1850 = vunpack.c.l.b16 %v1499
    %v1851 = vunpack.c.h.b16 %v1499
    %v1852 = vunpack.c.l.b16 %v1500
    %v1853 = vunpack.c.h.b16 %v1500
    %v1854 = vunpack.c.l.b16 %v1501
    %v1855 = vunpack.c.h.b16 %v1501
    %v1856 = vunpack.c.l.b16 %v1502
    %v1857 = vunpack.c.h.b16 %v1502
    %v1858 = vunpack.c.l.b16 %v1503
    %v1859 = vunpack.c.h.b16 %v1503
    %v1860 = vunpack.c.l.b16 %v1504
    %v1861 = vunpack.c.h.b16 %v1504
    %v1862 = vunpack.c.l.b16 %v1505
    %v1863 = vunpack.c.h.b16 %v1505
    %v1864 = vunpack.c.l.b16 %v1506
    %v1865 = vunpack.c.h.b16 %v1506
    %v1866 = vunpack.c.l.b16 %v1507
    %v1867 = vunpack.c.h.b16 %v1507
    %v1868 = vunpack.c.l.b16 %v1508
    %v1869 = vunpack.c.h.b16 %v1508
    %v1870 = vunpack.c.l.b16 %v1509
    %v1871 = vunpack.c.h.b16 %v1509
    %v1872 = vunpack.c.l.b16 %v1510
    %v1873 = vunpack.c.h.b16 %v1510
    %v1874 = vunpack.c.l.b16 %v1511
    %v1875 = vunpack.c.h.b16 %v1511
    %v1876 = vunpack.c.l.b16 %v1512
    %v1877 = vunpack.c.h.b16 %v1512
    %v1878 = vunpack.c.l.b16 %v1513
    %v1879 = vunpack.c.h.b16 %v1513
    %v1880 = vunpack.c.l.b16 %v1514
    %v1881 = vunpack.c.h.b16 %v1514
    %v1882 = vunpack.c.l.b16 %v1515
    %v1883 = vunpack.c.h.b16 %v1515
    %v1884 = vunpack.c.l.b16 %v1516
    %v1885 = vunpack.c.h.b16 %v1516
    %v1886 = vunpack.c.l.b16 %v1517
    %v1887 = vunpack.c.h.b16 %v1517
    %v1888 = vunpack.c.l.b16 %v1518
    %v1889 = vunpack.c.h.b16 %v1518
    %v1890 = vunpack.c.l.b16 %v1519
    %v1891 = vunpack.c.h.b16 %v1519
    %v1892 = vunpack.c.l.b16 %v1520
    %v1893 = vunpack.c.h.b16 %v1520
    %v1894 = vunpack.c.l.b16 %v1521
    %v1895 = vunpack.c.h.b16 %v1521
    %v1896 = vunpack.c.l.b16 %v1522
    %v1897 = vunpack.c.h.b16 %v1522
    %v1898 = vunpack.c.l.b16 %v1523
    %v1899 = vunpack.c.h.b16 %v1523
    %v1900 = vunpack.c.l.b16 %v1524
    %v1901 = vunpack.c.h.b16 %v1524
    %v1902 = vunpack.c.l.b16 %v1525
    %v1903 = vunpack.c.h.b16 %v1525
    %v1904 = vunpack.c.l.b16 %v1526
    %v1905 = vunpack.c.h.b16 %v1526
    %v1906 = vunpack.c.l.b16 %v1527
    %v1907 = vunpack.c.h.b16 %v1527
    %v1908 = vunpack.c.l.b16 %v1528
    %v1909 = vunpack.c.h.b16 %v1528
    %v1910 = vunpack.c.l.b16 %v1529
    %v1911 = vunpack.c.h.b16 %v1529
    %v1912 = vunpack.c.l.b16 %v1530
    %v1913 = vunpack.c.h.b16 %v1530
    %v1914 = vunpack.c.l.b16 %v1531
    %v1915 = vunpack.c.h.b16 %v1531
    %v1916 = vunpack.c.l.b16 %v1532
    %v1917 = vunpack.c.h.b16 %v1532
    %v1918 = vunpack.c.l.b16 %v1533
    %v1919 = vunpack.c.h.b16 %v1533
    %v1920 = vunpack.c.l.b16 %v1534
    %v1921 = vunpack.c.h.b16 %v1534
    %v1922 = vunpack.c.l.b16 %v1535
    %v1923 = vunpack.c.h.b16 %v1535
    %v1924 = vunpack.c.l.b16 %v1536
    %v1925 = vunpack.c.h.b16 %v1536
    %v1926 = vunpack.c.l.b16 %v1537
    %v1927 = vunpack.c.h.b16 %v1537
    %v1928 = vunpack.c.l.b16 %v1538
    %v1929 = vunpack.c.h.b16 %v1538
    %v1930 = vunpack.c.l.b16 %v1539
    %v1931 = vunpack.c.h.b16 %v1539
    %v1932 = vunpack.c.l.b16 %v1540
    %v1933 = vunpack.c.h.b16 %v1540
    %v1934 = vunpack.c.l.b16 %v1541
    %v1935 = vunpack.c.h.b16 %v1541
    %v1936 = vunpack.c.l.b16 %v1542
    %v1937 = vunpack.c.h.b16 %v1542
    %v1938 = vunpack.c.l.b16 %v1543
    %v1939 = vunpack.c.h.b16 %v1543
    %v1940 = vunpack.c.l.b16 %v1544
    %v1941 = vunpack.c.h.b16 %v1544
    %v1942 = vunpack.c.l.b16 %v1545
    %v1943 = vunpack.c.h.b16 %v1545
    %v1944 = vunpack.c.l.b16 %v1546
    %v1945 = vunpack.c.h.b16 %v1546
    %v1946 = vunpack.c.l.b16 %v1547
    %v1947 = vunpack.c.h.b16 %v1547
    %v1948 = vunpack.c.l.b16 %v1548
    %v1949 = vunpack.c.h.b16 %v1548
    %v1950 = vunpack.c.l.b16 %v1549
    %v1951 = vunpack.c.h.b16 %v1549
    %v1952 = vunpack.c.l.b16 %v1550
    %v1953 = vunpack.c.h.b16 %v1550
    %v1954 = vunpack.c.l.b16 %v1551
    %v1955 = vunpack.c.h.b16 %v1551
    %v1956 = vunpack.c.l.b16 %v1552
    %v1957 = vunpack.c.h.b16 %v1552
    %v1958 = vunpack.c.l.b16 %v1553
    %v1959 = vunpack.c.h.b16 %v1553
    %v1960 = vpack.c.b16 %v1708, %v1704
    %v1961 = vpack.c.b16 %v1709, %v1705
    %v1962 = vpack.c.b16 %v1710, %v1706
    %v1963 = vpack.c.b16 %v1711, %v1707
    %v1964 = vpack.c.b16 %v1716, %v1712
    %v1965 = vpack.c.b16 %v1717, %v1713
    %v1966 = vpack.c.b16 %v1718, %v1714
    %v1967 = vpack.c.b16 %v1719, %v1715
    %v1968 = vpack.c.b16 %v1724, %v1720
    %v1969 = vpack.c.b16 %v1725, %v1721
    %v1970 = vpack.c.b16 %v1726, %v1722
    %v1971 = vpack.c.b16 %v1727, %v1723
    %v1972 = vpack.c.b16 %v1732, %v1728
    %v1973 = vpack.c.b16 %v1733, %v1729
    %v1974 = vpack.c.b16 %v1734, %v1730
    %v1975 = vpack.c.b16 %v1735, %v1731
    %v1976 = vpack.c.b16 %v1740, %v1736
    %v1977 = vpack.c.b16 %v1741, %v1737
    %v1978 = vpack.c.b16 %v1742, %v1738
    %v1979 = vpack.c.b16 %v1743, %v1739
    %v1980 = vpack.c.b16 %v1748, %v1744
    %v1981 = vpack.c.b16 %v1749, %v1745
    %v1982 = vpack.c.b16 %v1750, %v1746
    %v1983 = vpack.c.b16 %v1751, %v1747
    %v1984 = vpack.c.b16 %v1756, %v1752
    %v1985 = vpack.c.b16 %v1757, %v1753
    %v1986 = vpack.c.b16 %v1758, %v1754
    %v1987 = vpack.c.b16 %v1759, %v1755
    %v1988 = vpack.c.b16 %v1764, %v1760
    %v1989 = vpack.c.b16 %v1765, %v1761
    %v1990 = vpack.c.b16 %v1766, %v1762
    %v1991 = vpack.c.b16 %v1767, %v1763
    %v1992 = vpack.c.b16 %v1772, %v1768
    %v1993 = vpack.c.b16 %v1773, %v1769
    %v1994 = vpack.c.b16 %v1774, %v1770
    %v1995 = vpack.c.b16 %v1775, %v1771
    %v1996 = vpack.c.b16 %v1780, %v1776
    %v1997 = vpack.c.b16 %v1781, %v1777
    %v1998 = vpack.c.b16 %v1782, %v1778
    %v1999 = vpack.c.b16 %v1783, %v1779
    %v2000 = vpack.c.b16 %v1788, %v1784
    %v2001 = vpack.c.b16 %v1789, %v1785
    %v2002 = vpack.c.b16 %v1790, %v1786
    %v2003 = vpack.c.b16 %v1791, %v1787
    %v2004 = vpack.c.b16 %v1796, %v1792
    %v2005 = vpack.c.b16 %v1797, %v1793
    %v2006 = vpack.c.b16 %v1798, %v1794
    %v2007 = vpack.c.b16 %v1799, %v1795
    %v2008 = vpack.c.b16 %v1804, %v1800
    %v2009 = vpack.c.b16 %v1805, %v1801
    %v2010 = vpack.c.b16 %v1806, %v1802
    %v2011 = vpack.c.b16 %v1807, %v1803
    %v2012 = vpack.c.b16 %v1812, %v1808
    %v2013 = vpack.c.b16 %v1813, %v1809
    %v2014 = vpack.c.b16 %v1814, %v1810
    %v2015 = vpack.c.b16 %v1815, %v1811
    %v2016 = vpack.c.b16 %v1820, %v1816
    %v2017 = vpack.c.b16 %v1821, %v1817
    %v2018 = vpack.c.b16 %v1822, %v1818
    %v2019 = vpack.c.b16 %v1823, %v1819
    %v2020 = vpack.c.b16 %v1828, %v1824
    %v2021 = vpack.c.b16 %v1829, %v1825
    %v2022 = vpack.c.b16 %v1830, %v1826
    %v2023 = vpack.c.b16 %v1831, %v1827
    %v2024 = vpack.c.b16 %v1836, %v1832
    %v2025 = vpack.c.b16 %v1837, %v1833
    %v2026 = vpack.c.b16 %v1838, %v1834
    %v2027 = vpack.c.b16 %v1839, %v1835
    %v2028 = vpack.c.b16 %v1844, %v1840
    %v2029 = vpack.c.b16 %v1845, %v1841
    %v2030 = vpack.c.b16 %v1846, %v1842
    %v2031 = vpack.c.b16 %v1847, %v1843
    %v2032 = vpack.c.b16 %v1852, %v1848
    %v2033 = vpack.c.b16 %v1853, %v1849
    %v2034 = vpack.c.b16 %v1854, %v1850
    %v2035 = vpack.c.b16 %v1855, %v1851
    %v2036 = vpack.c.b16 %v1860, %v1856
    %v2037 = vpack.c.b16 %v1861, %v1857
    %v2038 = vpack.c.b16 %v1862, %v1858
    %v2039 = vpack.c.b16 %v1863, %v1859
    %v2040 = vpack.c.b16 %v1868, %v1864
    %v2041 = vpack.c.b16 %v1869, %v1865
    %v2042 = vpack.c.b16 %v1870, %v1866
    %v2043 = vpack.c.b16 %v1871, %v1867
    %v2044 = vpack.c.b16 %v1876, %v1872
    %v2045 = vpack.c.b16 %v1877, %v1873
    %v2046 = vpack.c.b16 %v1878, %v1874
    %v2047 = vpack.c.b16 %v1879, %v1875
    %v2048 = vpack.c.b16 %v1884, %v1880
    %v2049 = vpack.c.b16 %v1885, %v1881
    %v2050 = vpack.c.b16 %v1886, %v1882
    %v2051 = vpack.c.b16 %v1887, %v1883
    %v2052 = vpack.c.b16 %v1892, %v1888
    %v2053 = vpack.c.b16 %v1893, %v1889
    %v2054 = vpack.c.b16 %v1894, %v1890
    %v2055 = vpack.c.b16 %v1895, %v1891
    %v2056 = vpack.c.b16 %v1900, %v1896
    %v2057 = vpack.c.b16 %v1901, %v1897
    %v2058 = vpack.c.b16 %v1902, %v1898
    %v2059 = vpack.c.b16 %v1903, %v1899
    %v2060 = vpack.c.b16 %v1908, %v1904
    %v2061 = vpack.c.b16 %v1909, %v1905
    %v2062 = vpack.c.b16 %v1910, %v1906
    %v2063 = vpack.c.b16 %v1911, %v1907
    %v2064 = vpack.c.b16 %v1916, %v1912
    %v2065 = vpack.c.b16 %v1917, %v1913
    %v2066 = vpack.c.b16 %v1918, %v1914
    %v2067 = vpack.c.b16 %v1919, %v1915
    %v2068 = vpack.c.b16 %v1924, %v1920
    %v2069 = vpack.c.b16 %v1925, %v1921
    %v2070 = vpack.c.b16 %v1926, %v1922
    %v2071 = vpack.c.b16 %v1927, %v1923
    %v2072 = vpack.c.b16 %v1932, %v1928
    %v2073 = vpack.c.b16 %v1933, %v1929
    %v2074 = vpack.c.b16 %v1934, %v1930
    %v2075 = vpack.c.b16 %v1935, %v1931
    %v2076 = vpack.c.b16 %v1940, %v1936
    %v2077 = vpack.c.b16 %v1941, %v1937
    %v2078 = vpack.c.b16 %v1942, %v1938
    %v2079 = vpack.c.b16 %v1943, %v1939
    %v2080 = vpack.c.b16 %v1948, %v1944
    %v2081 = vpack.c.b16 %v1949, %v1945
    %v2082 = vpack.c.b16 %v1950, %v1946
    %v2083 = vpack.c.b16 %v1951, %v1947
    %v2084 = vpack.c.b16 %v1956, %v1952
    %v2085 = vpack.c.b16 %v1957, %v1953
    %v2086 = vpack.c.b16 %v1958, %v1954
    %v2087 = vpack.c.b16 %v1959, %v1955
    %2216 = vmatprep.subr.bf16.mxu0 %v1961
    %2217 = vmatpush1.bf16.msra.mxu0 %v1960
    %2218 = vmatprep.subr.bf16.mxu0 %v1965
    %2219 = vmatpush1.bf16.msra.mxu0 %v1964
    %2220 = vmatprep.subr.bf16.mxu0 %v1969
    %2221 = vmatpush1.bf16.msra.mxu0 %v1968
    %2222 = vmatprep.subr.bf16.mxu0 %v1973
    %2223 = vmatpush1.bf16.msra.mxu0 %v1972
    %2224 = vmatprep.subr.bf16.mxu0 %v1977
    %2225 = vmatpush1.bf16.msra.mxu0 %v1976
    %2226 = vmatprep.subr.bf16.mxu0 %v1981
    %2227 = vmatpush1.bf16.msra.mxu0 %v1980
    %2228 = vmatprep.subr.bf16.mxu0 %v1985
    %2229 = vmatpush1.bf16.msra.mxu0 %v1984
    %2230 = vmatprep.subr.bf16.mxu0 %v1989
    %2231 = vmatpush1.bf16.msra.mxu0 %v1988
    %2232 = vmatprep.subr.bf16.mxu0 %v1993
    %2233 = vmatpush1.bf16.msra.mxu0 %v1992
    %2234 = vmatprep.subr.bf16.mxu0 %v1997
    %2235 = vmatpush1.bf16.msra.mxu0 %v1996
    %2236 = vmatprep.subr.bf16.mxu0 %v2001
    %2237 = vmatpush1.bf16.msra.mxu0 %v2000
    %2238 = vmatprep.subr.bf16.mxu0 %v2005
    %2239 = vmatpush1.bf16.msra.mxu0 %v2004
    %2240 = vmatprep.subr.bf16.mxu0 %v2009
    %2241 = vmatpush1.bf16.msra.mxu0 %v2008
    %2242 = vmatprep.subr.bf16.mxu0 %v2013
    %2243 = vmatpush1.bf16.msra.mxu0 %v2012
    %2244 = vmatprep.subr.bf16.mxu0 %v2017
    %2245 = vmatpush1.bf16.msra.mxu0 %v2016
    %2246 = vmatprep.subr.bf16.mxu0 %v2021
    %2247 = vmatpush1.bf16.msra.mxu0 %v2020
    %2248 = vmatprep.mubr.bf16.mxu0 %v1423
    %2249 = vmatmul.mubr.bf16.gmra.mrb[0].mxu0 %v1422
    %v2250 = vpop.f32.mrb[0].mxu0
    %v2251 = vadd.f32 %v1559, %v2250
    %v2252 = vpop.f32.mrb[0].mxu0
    %v2253 = vadd.f32 %v1563, %v2252
    %v2254 = vpop.f32.mrb[0].mxu0
    %v2255 = vpop.f32.mrb[0].mxu0
    %2256 = vdwg.mxu0
    %2257 = vmatprep.subr.bf16.mxu0 %v2025
    %2258 = vmatpush1.bf16.msra.mxu0 %v2024
    %2259 = vmatprep.subr.bf16.mxu0 %v2029
    %2260 = vmatpush1.bf16.msra.mxu0 %v2028
    %2261 = vmatprep.subr.bf16.mxu0 %v2033
    %2262 = vmatpush1.bf16.msra.mxu0 %v2032
    %2263 = vmatprep.subr.bf16.mxu0 %v2037
    %2264 = vmatpush1.bf16.msra.mxu0 %v2036
    %2265 = vmatprep.subr.bf16.mxu0 %v2041
    %2266 = vmatpush1.bf16.msra.mxu0 %v2040
    %2267 = vmatprep.subr.bf16.mxu0 %v2045
    %2268 = vmatpush1.bf16.msra.mxu0 %v2044
    %2269 = vmatprep.subr.bf16.mxu0 %v2049
    %2270 = vmatpush1.bf16.msra.mxu0 %v2048
    %2271 = vmatprep.subr.bf16.mxu0 %v2053
    %2272 = vmatpush1.bf16.msra.mxu0 %v2052
    %2273 = vmatprep.subr.bf16.mxu0 %v2057
    %2274 = vmatpush1.bf16.msra.mxu0 %v2056
    %2275 = vmatprep.subr.bf16.mxu0 %v2061
    %2276 = vmatpush1.bf16.msra.mxu0 %v2060
    %2277 = vmatprep.subr.bf16.mxu0 %v2065
    %2278 = vmatpush1.bf16.msra.mxu0 %v2064
    %2279 = vmatprep.subr.bf16.mxu0 %v2069
    %2280 = vmatpush1.bf16.msra.mxu0 %v2068
    %2281 = vmatprep.subr.bf16.mxu0 %v2073
    %2282 = vmatpush1.bf16.msra.mxu0 %v2072
    %2283 = vmatprep.subr.bf16.mxu0 %v2077
    %2284 = vmatpush1.bf16.msra.mxu0 %v2076
    %2285 = vmatprep.subr.bf16.mxu0 %v2081
    %2286 = vmatpush1.bf16.msra.mxu0 %v2080
    %2287 = vmatprep.subr.bf16.mxu0 %v2085
    %2288 = vmatpush1.bf16.msra.mxu0 %v2084
    %2289 = vmatprep.mubr.bf16.mxu0 %v1425
    %2290 = vmatmul.mubr.bf16.gmra.mrb[0].mxu0 %v1424
    %v2291 = vpop.f32.mrb[0].mxu0
    %v2292 = vadd.f32 %v2251, %v2291
    %v2293 = vpop.f32.mrb[0].mxu0
    %v2294 = vadd.f32 %v2253, %v2293
    %v2295 = vpop.f32.mrb[0].mxu0
    %v2296 = vpop.f32.mrb[0].mxu0
    %2297 = vdwg.mxu0
    %2298 = vmatprep.subr.bf16.mxu0 %v1963
    %2299 = vmatpush1.bf16.msra.mxu0 %v1962
    %2300 = vmatprep.subr.bf16.mxu0 %v1967
    %2301 = vmatpush1.bf16.msra.mxu0 %v1966
    %2302 = vmatprep.subr.bf16.mxu0 %v1971
    %2303 = vmatpush1.bf16.msra.mxu0 %v1970
    %2304 = vmatprep.subr.bf16.mxu0 %v1975
    %2305 = vmatpush1.bf16.msra.mxu0 %v1974
    %2306 = vmatprep.subr.bf16.mxu0 %v1979
    %2307 = vmatpush1.bf16.msra.mxu0 %v1978
    %2308 = vmatprep.subr.bf16.mxu0 %v1983
    %2309 = vmatpush1.bf16.msra.mxu0 %v1982
    %2310 = vmatprep.subr.bf16.mxu0 %v1987
    %2311 = vmatpush1.bf16.msra.mxu0 %v1986
    %2312 = vmatprep.subr.bf16.mxu0 %v1991
    %2313 = vmatpush1.bf16.msra.mxu0 %v1990
    %2314 = vmatprep.subr.bf16.mxu0 %v1995
    %2315 = vmatpush1.bf16.msra.mxu0 %v1994
    %2316 = vmatprep.subr.bf16.mxu0 %v1999
    %2317 = vmatpush1.bf16.msra.mxu0 %v1998
    %2318 = vmatprep.subr.bf16.mxu0 %v2003
    %2319 = vmatpush1.bf16.msra.mxu0 %v2002
    %2320 = vmatprep.subr.bf16.mxu0 %v2007
    %2321 = vmatpush1.bf16.msra.mxu0 %v2006
    %2322 = vmatprep.subr.bf16.mxu0 %v2011
    %2323 = vmatpush1.bf16.msra.mxu0 %v2010
    %2324 = vmatprep.subr.bf16.mxu0 %v2015
    %2325 = vmatpush1.bf16.msra.mxu0 %v2014
    %2326 = vmatprep.subr.bf16.mxu0 %v2019
    %2327 = vmatpush1.bf16.msra.mxu0 %v2018
    %2328 = vmatprep.subr.bf16.mxu0 %v2023
    %2329 = vmatpush1.bf16.msra.mxu0 %v2022
    %2330 = vmatprep.mubr.bf16.mxu0 %v1423
    %2331 = vmatmul.mubr.bf16.gmra.mrb[0].mxu0 %v1422
    %v2332 = vpop.f32.mrb[0].mxu0
    %v2333 = vadd.f32 %v1567, %v2332
    %v2334 = vpop.f32.mrb[0].mxu0
    %v2335 = vadd.f32 %v1571, %v2334
    %v2336 = vpop.f32.mrb[0].mxu0
    %v2337 = vpop.f32.mrb[0].mxu0
    %2338 = vdwg.mxu0
    %2339 = vmatprep.subr.bf16.mxu0 %v2027
    %2340 = vmatpush1.bf16.msra.mxu0 %v2026
    %2341 = vmatprep.subr.bf16.mxu0 %v2031
    %2342 = vmatpush1.bf16.msra.mxu0 %v2030
    %2343 = vmatprep.subr.bf16.mxu0 %v2035
    %2344 = vmatpush1.bf16.msra.mxu0 %v2034
    %2345 = vmatprep.subr.bf16.mxu0 %v2039
    %2346 = vmatpush1.bf16.msra.mxu0 %v2038
    %2347 = vmatprep.subr.bf16.mxu0 %v2043
    %2348 = vmatpush1.bf16.msra.mxu0 %v2042
    %2349 = vmatprep.subr.bf16.mxu0 %v2047
    %2350 = vmatpush1.bf16.msra.mxu0 %v2046
    %2351 = vmatprep.subr.bf16.mxu0 %v2051
    %2352 = vmatpush1.bf16.msra.mxu0 %v2050
    %2353 = vmatprep.subr.bf16.mxu0 %v2055
    %2354 = vmatpush1.bf16.msra.mxu0 %v2054
    %2355 = vmatprep.subr.bf16.mxu0 %v2059
    %2356 = vmatpush1.bf16.msra.mxu0 %v2058
    %2357 = vmatprep.subr.bf16.mxu0 %v2063
    %2358 = vmatpush1.bf16.msra.mxu0 %v2062
    %2359 = vmatprep.subr.bf16.mxu0 %v2067
    %2360 = vmatpush1.bf16.msra.mxu0 %v2066
    %2361 = vmatprep.subr.bf16.mxu0 %v2071
    %2362 = vmatpush1.bf16.msra.mxu0 %v2070
    %2363 = vmatprep.subr.bf16.mxu0 %v2075
    %2364 = vmatpush1.bf16.msra.mxu0 %v2074
    %2365 = vmatprep.subr.bf16.mxu0 %v2079
    %2366 = vmatpush1.bf16.msra.mxu0 %v2078
    %2367 = vmatprep.subr.bf16.mxu0 %v2083
    %2368 = vmatpush1.bf16.msra.mxu0 %v2082
    %2369 = vmatprep.subr.bf16.mxu0 %v2087
    %2370 = vmatpush1.bf16.msra.mxu0 %v2086
    %2371 = vmatprep.mubr.bf16.mxu0 %v1425
    %2372 = vmatmul.mubr.bf16.gmra.mrb[0].mxu0 %v1424
    %v2373 = vpop.f32.mrb[0].mxu0
    %v2374 = vadd.f32 %v2333, %v2373
    %v2375 = vpop.f32.mrb[0].mxu0
    %v2376 = vadd.f32 %v2335, %v2375
    %v2377 = vpop.f32.mrb[0].mxu0
    %v2378 = vpop.f32.mrb[0].mxu0
    %2379 = vdwg.mxu0
    %v2380 = vmax.f32 %v2292, 0.0
    %v2381 = vmax.f32 %v2294, 0.0
    %v2382 = vmax.f32 %v2374, 0.0
    %v2383 = vmax.f32 %v2376, 0.0
    %v2384 = vpack.c.bf16 %v2380, %v2380
    %v2385 = vpack.c.bf16 %v2381, %v2381
    %v2386 = vpack.c.bf16 %v2382, %v2382
    %v2387 = vpack.c.bf16 %v2383, %v2383
    %v2388 = vld [vmem:[#allocation10] sm:$0xff]
    %v2389 = vld [vmem:[#allocation10 + $0x8] sm:$0xff]
    %v2390 = vld [vmem:[#allocation10 + $0x10] sm:$0xff]
    %v2391 = vld [vmem:[#allocation10 + $0x18] sm:$0xff]
    %v2392 = vld [vmem:[#allocation10 + $0x20] sm:$0xff]
    %v2393 = vld [vmem:[#allocation10 + $0x28] sm:$0xff]
    %v2394 = vld [vmem:[#allocation10 + $0x30] sm:$0xff]
    %v2395 = vld [vmem:[#allocation10 + $0x38] sm:$0xff]
    %v2396 = vld [vmem:[#allocation10 + $0x40] sm:$0xff]
    %v2397 = vld [vmem:[#allocation10 + $0x48] sm:$0xff]
    %v2398 = vld [vmem:[#allocation10 + $0x50] sm:$0xff]
    %v2399 = vld [vmem:[#allocation10 + $0x58] sm:$0xff]
    %v2400 = vld [vmem:[#allocation10 + $0x60] sm:$0xff]
    %v2401 = vld [vmem:[#allocation10 + $0x68] sm:$0xff]
    %v2402 = vld [vmem:[#allocation10 + $0x70] sm:$0xff]
    %v2403 = vld [vmem:[#allocation10 + $0x78] sm:$0xff]
    %v2404 = vld [vmem:[#allocation10 + $0x80] sm:$0xff]
    %v2405 = vld [vmem:[#allocation10 + $0x88] sm:$0xff]
    %v2406 = vld [vmem:[#allocation10 + $0x90] sm:$0xff]
    %v2407 = vld [vmem:[#allocation10 + $0x98] sm:$0xff]
    %v2408 = vld [vmem:[#allocation10 + $0xa0] sm:$0xff]
    %v2409 = vld [vmem:[#allocation10 + $0xa8] sm:$0xff]
    %v2410 = vld [vmem:[#allocation10 + $0xb0] sm:$0xff]
    %v2411 = vld [vmem:[#allocation10 + $0xb8] sm:$0xff]
    %v2412 = vld [vmem:[#allocation10 + $0xc0] sm:$0xff]
    %v2413 = vld [vmem:[#allocation10 + $0xc8] sm:$0xff]
    %v2414 = vld [vmem:[#allocation10 + $0xd0] sm:$0xff]
    %v2415 = vld [vmem:[#allocation10 + $0xd8] sm:$0xff]
    %v2416 = vld [vmem:[#allocation10 + $0xe0] sm:$0xff]
    %v2417 = vld [vmem:[#allocation10 + $0xe8] sm:$0xff]
    %v2418 = vld [vmem:[#allocation10 + $0xf0] sm:$0xff]
    %v2419 = vld [vmem:[#allocation10 + $0xf8] sm:$0xff]
    %v2420 = vld [vmem:[#allocation10 + $0x100] sm:$0xff]
    %v2421 = vld [vmem:[#allocation10 + $0x108] sm:$0xff]
    %v2422 = vld [vmem:[#allocation10 + $0x110] sm:$0xff]
    %v2423 = vld [vmem:[#allocation10 + $0x118] sm:$0xff]
    %v2424 = vld [vmem:[#allocation10 + $0x120] sm:$0xff]
    %v2425 = vld [vmem:[#allocation10 + $0x128] sm:$0xff]
    %v2426 = vld [vmem:[#allocation10 + $0x130] sm:$0xff]
    %v2427 = vld [vmem:[#allocation10 + $0x138] sm:$0xff]
    %v2428 = vld [vmem:[#allocation10 + $0x140] sm:$0xff]
    %v2429 = vld [vmem:[#allocation10 + $0x148] sm:$0xff]
    %v2430 = vld [vmem:[#allocation10 + $0x150] sm:$0xff]
    %v2431 = vld [vmem:[#allocation10 + $0x158] sm:$0xff]
    %v2432 = vld [vmem:[#allocation10 + $0x160] sm:$0xff]
    %v2433 = vld [vmem:[#allocation10 + $0x168] sm:$0xff]
    %v2434 = vld [vmem:[#allocation10 + $0x170] sm:$0xff]
    %v2435 = vld [vmem:[#allocation10 + $0x178] sm:$0xff]
    %v2436 = vld [vmem:[#allocation10 + $0x180] sm:$0xff]
    %v2437 = vld [vmem:[#allocation10 + $0x188] sm:$0xff]
    %v2438 = vld [vmem:[#allocation10 + $0x190] sm:$0xff]
    %v2439 = vld [vmem:[#allocation10 + $0x198] sm:$0xff]
    %v2440 = vld [vmem:[#allocation10 + $0x1a0] sm:$0xff]
    %v2441 = vld [vmem:[#allocation10 + $0x1a8] sm:$0xff]
    %v2442 = vld [vmem:[#allocation10 + $0x1b0] sm:$0xff]
    %v2443 = vld [vmem:[#allocation10 + $0x1b8] sm:$0xff]
    %v2444 = vld [vmem:[#allocation10 + $0x1c0] sm:$0xff]
    %v2445 = vld [vmem:[#allocation10 + $0x1c8] sm:$0xff]
    %v2446 = vld [vmem:[#allocation10 + $0x1d0] sm:$0xff]
    %v2447 = vld [vmem:[#allocation10 + $0x1d8] sm:$0xff]
    %v2448 = vld [vmem:[#allocation10 + $0x1e0] sm:$0xff]
    %v2449 = vld [vmem:[#allocation10 + $0x1e8] sm:$0xff]
    %v2450 = vld [vmem:[#allocation10 + $0x1f0] sm:$0xff]
    %v2451 = vld [vmem:[#allocation10 + $0x1f8] sm:$0xff]
    %v2452 = vld [vmem:[%s8] sm:$0x3]
    %v2454 = vlaneseq
    %v2455 = vshrl.u32 %v2454, 7
    %v2456 = vsub.s32 0, %v2455
    %v2457 = vrot.slane %v2452, %v2456
    %v2458 = vlaneseq
    %v2459 = vshrl.u32 %v2458, 7
    %v2460 = vsub.s32 1, %v2459
    %v2461 = vrot.slane %v2452, %v2460
    %v2528 = vunpack.c.l.b16 %v2388
    %v2529 = vunpack.c.h.b16 %v2388
    %v2530 = vunpack.c.l.b16 %v2389
    %v2531 = vunpack.c.h.b16 %v2389
    %v2532 = vunpack.c.l.b16 %v2390
    %v2533 = vunpack.c.h.b16 %v2390
    %v2534 = vunpack.c.l.b16 %v2391
    %v2535 = vunpack.c.h.b16 %v2391
    %v2536 = vunpack.c.l.b16 %v2392
    %v2537 = vunpack.c.h.b16 %v2392
    %v2538 = vunpack.c.l.b16 %v2393
    %v2539 = vunpack.c.h.b16 %v2393
    %v2540 = vunpack.c.l.b16 %v2394
    %v2541 = vunpack.c.h.b16 %v2394
    %v2542 = vunpack.c.l.b16 %v2395
    %v2543 = vunpack.c.h.b16 %v2395
    %v2544 = vunpack.c.l.b16 %v2396
    %v2545 = vunpack.c.h.b16 %v2396
    %v2546 = vunpack.c.l.b16 %v2397
    %v2547 = vunpack.c.h.b16 %v2397
    %v2548 = vunpack.c.l.b16 %v2398
    %v2549 = vunpack.c.h.b16 %v2398
    %v2550 = vunpack.c.l.b16 %v2399
    %v2551 = vunpack.c.h.b16 %v2399
    %v2552 = vunpack.c.l.b16 %v2400
    %v2553 = vunpack.c.h.b16 %v2400
    %v2554 = vunpack.c.l.b16 %v2401
    %v2555 = vunpack.c.h.b16 %v2401
    %v2556 = vunpack.c.l.b16 %v2402
    %v2557 = vunpack.c.h.b16 %v2402
    %v2558 = vunpack.c.l.b16 %v2403
    %v2559 = vunpack.c.h.b16 %v2403
    %v2560 = vunpack.c.l.b16 %v2404
    %v2561 = vunpack.c.h.b16 %v2404
    %v2562 = vunpack.c.l.b16 %v2405
    %v2563 = vunpack.c.h.b16 %v2405
    %v2564 = vunpack.c.l.b16 %v2406
    %v2565 = vunpack.c.h.b16 %v2406
    %v2566 = vunpack.c.l.b16 %v2407
    %v2567 = vunpack.c.h.b16 %v2407
    %v2568 = vunpack.c.l.b16 %v2408
    %v2569 = vunpack.c.h.b16 %v2408
    %v2570 = vunpack.c.l.b16 %v2409
    %v2571 = vunpack.c.h.b16 %v2409
    %v2572 = vunpack.c.l.b16 %v2410
    %v2573 = vunpack.c.h.b16 %v2410
    %v2574 = vunpack.c.l.b16 %v2411
    %v2575 = vunpack.c.h.b16 %v2411
    %v2576 = vunpack.c.l.b16 %v2412
    %v2577 = vunpack.c.h.b16 %v2412
    %v2578 = vunpack.c.l.b16 %v2413
    %v2579 = vunpack.c.h.b16 %v2413
    %v2580 = vunpack.c.l.b16 %v2414
    %v2581 = vunpack.c.h.b16 %v2414
    %v2582 = vunpack.c.l.b16 %v2415
    %v2583 = vunpack.c.h.b16 %v2415
    %v2584 = vunpack.c.l.b16 %v2416
    %v2585 = vunpack.c.h.b16 %v2416
    %v2586 = vunpack.c.l.b16 %v2417
    %v2587 = vunpack.c.h.b16 %v2417
    %v2588 = vunpack.c.l.b16 %v2418
    %v2589 = vunpack.c.h.b16 %v2418
    %v2590 = vunpack.c.l.b16 %v2419
    %v2591 = vunpack.c.h.b16 %v2419
    %v2592 = vunpack.c.l.b16 %v2420
    %v2593 = vunpack.c.h.b16 %v2420
    %v2594 = vunpack.c.l.b16 %v2421
    %v2595 = vunpack.c.h.b16 %v2421
    %v2596 = vunpack.c.l.b16 %v2422
    %v2597 = vunpack.c.h.b16 %v2422
    %v2598 = vunpack.c.l.b16 %v2423
    %v2599 = vunpack.c.h.b16 %v2423
    %v2600 = vunpack.c.l.b16 %v2424
    %v2601 = vunpack.c.h.b16 %v2424
    %v2602 = vunpack.c.l.b16 %v2425
    %v2603 = vunpack.c.h.b16 %v2425
    %v2604 = vunpack.c.l.b16 %v2426
    %v2605 = vunpack.c.h.b16 %v2426
    %v2606 = vunpack.c.l.b16 %v2427
    %v2607 = vunpack.c.h.b16 %v2427
    %v2608 = vunpack.c.l.b16 %v2428
    %v2609 = vunpack.c.h.b16 %v2428
    %v2610 = vunpack.c.l.b16 %v2429
    %v2611 = vunpack.c.h.b16 %v2429
    %v2612 = vunpack.c.l.b16 %v2430
    %v2613 = vunpack.c.h.b16 %v2430
    %v2614 = vunpack.c.l.b16 %v2431
    %v2615 = vunpack.c.h.b16 %v2431
    %v2616 = vunpack.c.l.b16 %v2432
    %v2617 = vunpack.c.h.b16 %v2432
    %v2618 = vunpack.c.l.b16 %v2433
    %v2619 = vunpack.c.h.b16 %v2433
    %v2620 = vunpack.c.l.b16 %v2434
    %v2621 = vunpack.c.h.b16 %v2434
    %v2622 = vunpack.c.l.b16 %v2435
    %v2623 = vunpack.c.h.b16 %v2435
    %v2624 = vunpack.c.l.b16 %v2436
    %v2625 = vunpack.c.h.b16 %v2436
    %v2626 = vunpack.c.l.b16 %v2437
    %v2627 = vunpack.c.h.b16 %v2437
    %v2628 = vunpack.c.l.b16 %v2438
    %v2629 = vunpack.c.h.b16 %v2438
    %v2630 = vunpack.c.l.b16 %v2439
    %v2631 = vunpack.c.h.b16 %v2439
    %v2632 = vunpack.c.l.b16 %v2440
    %v2633 = vunpack.c.h.b16 %v2440
    %v2634 = vunpack.c.l.b16 %v2441
    %v2635 = vunpack.c.h.b16 %v2441
    %v2636 = vunpack.c.l.b16 %v2442
    %v2637 = vunpack.c.h.b16 %v2442
    %v2638 = vunpack.c.l.b16 %v2443
    %v2639 = vunpack.c.h.b16 %v2443
    %v2640 = vunpack.c.l.b16 %v2444
    %v2641 = vunpack.c.h.b16 %v2444
    %v2642 = vunpack.c.l.b16 %v2445
    %v2643 = vunpack.c.h.b16 %v2445
    %v2644 = vunpack.c.l.b16 %v2446
    %v2645 = vunpack.c.h.b16 %v2446
    %v2646 = vunpack.c.l.b16 %v2447
    %v2647 = vunpack.c.h.b16 %v2447
    %v2648 = vunpack.c.l.b16 %v2448
    %v2649 = vunpack.c.h.b16 %v2448
    %v2650 = vunpack.c.l.b16 %v2449
    %v2651 = vunpack.c.h.b16 %v2449
    %v2652 = vunpack.c.l.b16 %v2450
    %v2653 = vunpack.c.h.b16 %v2450
    %v2654 = vunpack.c.l.b16 %v2451
    %v2655 = vunpack.c.h.b16 %v2451
    %v2656 = vpack.c.b16 %v2530, %v2528
    %v2657 = vpack.c.b16 %v2531, %v2529
    %v2658 = vpack.c.b16 %v2534, %v2532
    %v2659 = vpack.c.b16 %v2535, %v2533
    %v2660 = vpack.c.b16 %v2538, %v2536
    %v2661 = vpack.c.b16 %v2539, %v2537
    %v2662 = vpack.c.b16 %v2542, %v2540
    %v2663 = vpack.c.b16 %v2543, %v2541
    %v2664 = vpack.c.b16 %v2546, %v2544
    %v2665 = vpack.c.b16 %v2547, %v2545
    %v2666 = vpack.c.b16 %v2550, %v2548
    %v2667 = vpack.c.b16 %v2551, %v2549
    %v2668 = vpack.c.b16 %v2554, %v2552
    %v2669 = vpack.c.b16 %v2555, %v2553
    %v2670 = vpack.c.b16 %v2558, %v2556
    %v2671 = vpack.c.b16 %v2559, %v2557
    %v2672 = vpack.c.b16 %v2562, %v2560
    %v2673 = vpack.c.b16 %v2563, %v2561
    %v2674 = vpack.c.b16 %v2566, %v2564
    %v2675 = vpack.c.b16 %v2567, %v2565
    %v2676 = vpack.c.b16 %v2570, %v2568
    %v2677 = vpack.c.b16 %v2571, %v2569
    %v2678 = vpack.c.b16 %v2574, %v2572
    %v2679 = vpack.c.b16 %v2575, %v2573
    %v2680 = vpack.c.b16 %v2578, %v2576
    %v2681 = vpack.c.b16 %v2579, %v2577
    %v2682 = vpack.c.b16 %v2582, %v2580
    %v2683 = vpack.c.b16 %v2583, %v2581
    %v2684 = vpack.c.b16 %v2586, %v2584
    %v2685 = vpack.c.b16 %v2587, %v2585
    %v2686 = vpack.c.b16 %v2590, %v2588
    %v2687 = vpack.c.b16 %v2591, %v2589
    %v2688 = vpack.c.b16 %v2594, %v2592
    %v2689 = vpack.c.b16 %v2595, %v2593
    %v2690 = vpack.c.b16 %v2598, %v2596
    %v2691 = vpack.c.b16 %v2599, %v2597
    %v2692 = vpack.c.b16 %v2602, %v2600
    %v2693 = vpack.c.b16 %v2603, %v2601
    %v2694 = vpack.c.b16 %v2606, %v2604
    %v2695 = vpack.c.b16 %v2607, %v2605
    %v2696 = vpack.c.b16 %v2610, %v2608
    %v2697 = vpack.c.b16 %v2611, %v2609
    %v2698 = vpack.c.b16 %v2614, %v2612
    %v2699 = vpack.c.b16 %v2615, %v2613
    %v2700 = vpack.c.b16 %v2618, %v2616
    %v2701 = vpack.c.b16 %v2619, %v2617
    %v2702 = vpack.c.b16 %v2622, %v2620
    %v2703 = vpack.c.b16 %v2623, %v2621
    %v2704 = vpack.c.b16 %v2626, %v2624
    %v2705 = vpack.c.b16 %v2627, %v2625
    %v2706 = vpack.c.b16 %v2630, %v2628
    %v2707 = vpack.c.b16 %v2631, %v2629
    %v2708 = vpack.c.b16 %v2634, %v2632
    %v2709 = vpack.c.b16 %v2635, %v2633
    %v2710 = vpack.c.b16 %v2638, %v2636
    %v2711 = vpack.c.b16 %v2639, %v2637
    %v2712 = vpack.c.b16 %v2642, %v2640
    %v2713 = vpack.c.b16 %v2643, %v2641
    %v2714 = vpack.c.b16 %v2646, %v2644
    %v2715 = vpack.c.b16 %v2647, %v2645
    %v2716 = vpack.c.b16 %v2650, %v2648
    %v2717 = vpack.c.b16 %v2651, %v2649
    %v2718 = vpack.c.b16 %v2654, %v2652
    %v2719 = vpack.c.b16 %v2655, %v2653
    %2784 = vmatprep.subr.bf16.mxu0 %v2657
    %2785 = vmatpush1.bf16.msra.mxu0 %v2656
    %2786 = vmatprep.subr.bf16.mxu0 %v2659
    %2787 = vmatpush1.bf16.msra.mxu0 %v2658
    %2788 = vmatprep.subr.bf16.mxu0 %v2661
    %2789 = vmatpush1.bf16.msra.mxu0 %v2660
    %2790 = vmatprep.subr.bf16.mxu0 %v2663
    %2791 = vmatpush1.bf16.msra.mxu0 %v2662
    %2792 = vmatprep.subr.bf16.mxu0 %v2665
    %2793 = vmatpush1.bf16.msra.mxu0 %v2664
    %2794 = vmatprep.subr.bf16.mxu0 %v2667
    %2795 = vmatpush1.bf16.msra.mxu0 %v2666
    %2796 = vmatprep.subr.bf16.mxu0 %v2669
    %2797 = vmatpush1.bf16.msra.mxu0 %v2668
    %2798 = vmatprep.subr.bf16.mxu0 %v2671
    %2799 = vmatpush1.bf16.msra.mxu0 %v2670
    %2800 = vmatprep.subr.bf16.mxu0 %v2673
    %2801 = vmatpush1.bf16.msra.mxu0 %v2672
    %2802 = vmatprep.subr.bf16.mxu0 %v2675
    %2803 = vmatpush1.bf16.msra.mxu0 %v2674
    %2804 = vmatprep.subr.bf16.mxu0 %v2677
    %2805 = vmatpush1.bf16.msra.mxu0 %v2676
    %2806 = vmatprep.subr.bf16.mxu0 %v2679
    %2807 = vmatpush1.bf16.msra.mxu0 %v2678
    %2808 = vmatprep.subr.bf16.mxu0 %v2681
    %2809 = vmatpush1.bf16.msra.mxu0 %v2680
    %2810 = vmatprep.subr.bf16.mxu0 %v2683
    %2811 = vmatpush1.bf16.msra.mxu0 %v2682
    %2812 = vmatprep.subr.bf16.mxu0 %v2685
    %2813 = vmatpush1.bf16.msra.mxu0 %v2684
    %2814 = vmatprep.subr.bf16.mxu0 %v2687
    %2815 = vmatpush1.bf16.msra.mxu0 %v2686
    %2816 = vmatprep.mubr.bf16.mxu0 %v2385
    %2817 = vmatmul.mubr.bf16.gmra.mrb[0].mxu0 %v2384
    %v2818 = vpop.f32.mrb[0].mxu0
    %v2819 = vadd.f32 %v2457, %v2818
    %v2820 = vpop.f32.mrb[0].mxu0
    %v2821 = vadd.f32 %v2461, %v2820
    %v2822 = vpop.f32.mrb[0].mxu0
    %v2823 = vpop.f32.mrb[0].mxu0
    %2824 = vdwg.mxu0
    %2825 = vmatprep.subr.bf16.mxu0 %v2689
    %2826 = vmatpush1.bf16.msra.mxu0 %v2688
    %2827 = vmatprep.subr.bf16.mxu0 %v2691
    %2828 = vmatpush1.bf16.msra.mxu0 %v2690
    %2829 = vmatprep.subr.bf16.mxu0 %v2693
    %2830 = vmatpush1.bf16.msra.mxu0 %v2692
    %2831 = vmatprep.subr.bf16.mxu0 %v2695
    %2832 = vmatpush1.bf16.msra.mxu0 %v2694
    %2833 = vmatprep.subr.bf16.mxu0 %v2697
    %2834 = vmatpush1.bf16.msra.mxu0 %v2696
    %2835 = vmatprep.subr.bf16.mxu0 %v2699
    %2836 = vmatpush1.bf16.msra.mxu0 %v2698
    %2837 = vmatprep.subr.bf16.mxu0 %v2701
    %2838 = vmatpush1.bf16.msra.mxu0 %v2700
    %2839 = vmatprep.subr.bf16.mxu0 %v2703
    %2840 = vmatpush1.bf16.msra.mxu0 %v2702
    %2841 = vmatprep.subr.bf16.mxu0 %v2705
    %2842 = vmatpush1.bf16.msra.mxu0 %v2704
    %2843 = vmatprep.subr.bf16.mxu0 %v2707
    %2844 = vmatpush1.bf16.msra.mxu0 %v2706
    %2845 = vmatprep.subr.bf16.mxu0 %v2709
    %2846 = vmatpush1.bf16.msra.mxu0 %v2708
    %2847 = vmatprep.subr.bf16.mxu0 %v2711
    %2848 = vmatpush1.bf16.msra.mxu0 %v2710
    %2849 = vmatprep.subr.bf16.mxu0 %v2713
    %2850 = vmatpush1.bf16.msra.mxu0 %v2712
    %2851 = vmatprep.subr.bf16.mxu0 %v2715
    %2852 = vmatpush1.bf16.msra.mxu0 %v2714
    %2853 = vmatprep.subr.bf16.mxu0 %v2717
    %2854 = vmatpush1.bf16.msra.mxu0 %v2716
    %2855 = vmatprep.subr.bf16.mxu0 %v2719
    %2856 = vmatpush1.bf16.msra.mxu0 %v2718
    %2857 = vmatprep.mubr.bf16.mxu0 %v2387
    %2858 = vmatmul.mubr.bf16.gmra.mrb[0].mxu0 %v2386
    %v2859 = vpop.f32.mrb[0].mxu0
    %v2860 = vadd.f32 %v2819, %v2859
    %v2861 = vpop.f32.mrb[0].mxu0
    %v2862 = vadd.f32 %v2821, %v2861
    %v2863 = vpop.f32.mrb[0].mxu0
    %v2864 = vpop.f32.mrb[0].mxu0
    %2865 = vdwg.mxu0
    %v2866 = vmax.f32 %v2860, 0.0
    %v2867 = vmax.f32 %v2862, 0.0
    %v2868 = vpack.c.bf16 %v2866, %v2866
    %v2869 = vpack.c.bf16 %v2867, %v2867
    %v2870 = vld [vmem:[#allocation11] sm:$0xff]
    %v2871 = vld [vmem:[#allocation11 + $0x8] sm:$0xff]
    %v2872 = vld [vmem:[#allocation11 + $0x10] sm:$0xff]
    %v2873 = vld [vmem:[#allocation11 + $0x18] sm:$0xff]
    %v2874 = vld [vmem:[#allocation11 + $0x20] sm:$0xff]
    %v2875 = vld [vmem:[#allocation11 + $0x28] sm:$0xff]
    %v2876 = vld [vmem:[#allocation11 + $0x30] sm:$0xff]
    %v2877 = vld [vmem:[#allocation11 + $0x38] sm:$0xff]
    %v2878 = vld [vmem:[#allocation11 + $0x40] sm:$0xff]
    %v2879 = vld [vmem:[#allocation11 + $0x48] sm:$0xff]
    %v2880 = vld [vmem:[#allocation11 + $0x50] sm:$0xff]
    %v2881 = vld [vmem:[#allocation11 + $0x58] sm:$0xff]
    %v2882 = vld [vmem:[#allocation11 + $0x60] sm:$0xff]
    %v2883 = vld [vmem:[#allocation11 + $0x68] sm:$0xff]
    %v2884 = vld [vmem:[#allocation11 + $0x70] sm:$0xff]
    %v2885 = vld [vmem:[#allocation11 + $0x78] sm:$0xff]
    %v2886 = vld [vmem:[#allocation11 + $0x80] sm:$0xff]
    %v2887 = vld [vmem:[#allocation11 + $0x88] sm:$0xff]
    %v2888 = vld [vmem:[#allocation11 + $0x90] sm:$0xff]
    %v2889 = vld [vmem:[#allocation11 + $0x98] sm:$0xff]
    %v2890 = vld [vmem:[#allocation11 + $0xa0] sm:$0xff]
    %v2891 = vld [vmem:[#allocation11 + $0xa8] sm:$0xff]
    %v2892 = vld [vmem:[#allocation11 + $0xb0] sm:$0xff]
    %v2893 = vld [vmem:[#allocation11 + $0xb8] sm:$0xff]
    %v2894 = vld [vmem:[#allocation11 + $0xc0] sm:$0xff]
    %v2895 = vld [vmem:[#allocation11 + $0xc8] sm:$0xff]
    %v2896 = vld [vmem:[#allocation11 + $0xd0] sm:$0xff]
    %v2897 = vld [vmem:[#allocation11 + $0xd8] sm:$0xff]
    %v2898 = vld [vmem:[#allocation11 + $0xe0] sm:$0xff]
    %v2899 = vld [vmem:[#allocation11 + $0xe8] sm:$0xff]
    %v2900 = vld [vmem:[#allocation11 + $0xf0] sm:$0xff]
    %v2901 = vld [vmem:[#allocation11 + $0xf8] sm:$0xff]
    %v2902 = vld [vmem:[%s10] sm:$0x3]
    %v2904 = vlaneseq
    %v2905 = vshrl.u32 %v2904, 7
    %v2906 = vsub.s32 0, %v2905
    %v2907 = vrot.slane %v2902, %v2906
    %v2908 = vlaneseq
    %v2909 = vshrl.u32 %v2908, 7
    %v2910 = vsub.s32 1, %v2909
    %v2911 = vrot.slane %v2902, %v2910
    %v2946 = vunpack.c.l.b16 %v2870
    %v2947 = vunpack.c.h.b16 %v2870
    %v2948 = vunpack.c.l.b16 %v2871
    %v2949 = vunpack.c.h.b16 %v2871
    %v2950 = vunpack.c.l.b16 %v2872
    %v2951 = vunpack.c.h.b16 %v2872
    %v2952 = vunpack.c.l.b16 %v2873
    %v2953 = vunpack.c.h.b16 %v2873
    %v2954 = vunpack.c.l.b16 %v2874
    %v2955 = vunpack.c.h.b16 %v2874
    %v2956 = vunpack.c.l.b16 %v2875
    %v2957 = vunpack.c.h.b16 %v2875
    %v2958 = vunpack.c.l.b16 %v2876
    %v2959 = vunpack.c.h.b16 %v2876
    %v2960 = vunpack.c.l.b16 %v2877
    %v2961 = vunpack.c.h.b16 %v2877
    %v2962 = vunpack.c.l.b16 %v2878
    %v2963 = vunpack.c.h.b16 %v2878
    %v2964 = vunpack.c.l.b16 %v2879
    %v2965 = vunpack.c.h.b16 %v2879
    %v2966 = vunpack.c.l.b16 %v2880
    %v2967 = vunpack.c.h.b16 %v2880
    %v2968 = vunpack.c.l.b16 %v2881
    %v2969 = vunpack.c.h.b16 %v2881
    %v2970 = vunpack.c.l.b16 %v2882
    %v2971 = vunpack.c.h.b16 %v2882
    %v2972 = vunpack.c.l.b16 %v2883
    %v2973 = vunpack.c.h.b16 %v2883
    %v2974 = vunpack.c.l.b16 %v2884
    %v2975 = vunpack.c.h.b16 %v2884
    %v2976 = vunpack.c.l.b16 %v2885
    %v2977 = vunpack.c.h.b16 %v2885
    %v2978 = vunpack.c.l.b16 %v2886
    %v2979 = vunpack.c.h.b16 %v2886
    %v2980 = vunpack.c.l.b16 %v2887
    %v2981 = vunpack.c.h.b16 %v2887
    %v2982 = vunpack.c.l.b16 %v2888
    %v2983 = vunpack.c.h.b16 %v2888
    %v2984 = vunpack.c.l.b16 %v2889
    %v2985 = vunpack.c.h.b16 %v2889
    %v2986 = vunpack.c.l.b16 %v2890
    %v2987 = vunpack.c.h.b16 %v2890
    %v2988 = vunpack.c.l.b16 %v2891
    %v2989 = vunpack.c.h.b16 %v2891
    %v2990 = vunpack.c.l.b16 %v2892
    %v2991 = vunpack.c.h.b16 %v2892
    %v2992 = vunpack.c.l.b16 %v2893
    %v2993 = vunpack.c.h.b16 %v2893
    %v2994 = vunpack.c.l.b16 %v2894
    %v2995 = vunpack.c.h.b16 %v2894
    %v2996 = vunpack.c.l.b16 %v2895
    %v2997 = vunpack.c.h.b16 %v2895
    %v2998 = vunpack.c.l.b16 %v2896
    %v2999 = vunpack.c.h.b16 %v2896
    %v3000 = vunpack.c.l.b16 %v2897
    %v3001 = vunpack.c.h.b16 %v2897
    %v3002 = vunpack.c.l.b16 %v2898
    %v3003 = vunpack.c.h.b16 %v2898
    %v3004 = vunpack.c.l.b16 %v2899
    %v3005 = vunpack.c.h.b16 %v2899
    %v3006 = vunpack.c.l.b16 %v2900
    %v3007 = vunpack.c.h.b16 %v2900
    %v3008 = vunpack.c.l.b16 %v2901
    %v3009 = vunpack.c.h.b16 %v2901
    %v3010 = vpack.c.b16 %v2948, %v2946
    %v3011 = vpack.c.b16 %v2949, %v2947
    %v3012 = vpack.c.b16 %v2952, %v2950
    %v3013 = vpack.c.b16 %v2953, %v2951
    %v3014 = vpack.c.b16 %v2956, %v2954
    %v3015 = vpack.c.b16 %v2957, %v2955
    %v3016 = vpack.c.b16 %v2960, %v2958
    %v3017 = vpack.c.b16 %v2961, %v2959
    %v3018 = vpack.c.b16 %v2964, %v2962
    %v3019 = vpack.c.b16 %v2965, %v2963
    %v3020 = vpack.c.b16 %v2968, %v2966
    %v3021 = vpack.c.b16 %v2969, %v2967
    %v3022 = vpack.c.b16 %v2972, %v2970
    %v3023 = vpack.c.b16 %v2973, %v2971
    %v3024 = vpack.c.b16 %v2976, %v2974
    %v3025 = vpack.c.b16 %v2977, %v2975
    %v3026 = vpack.c.b16 %v2980, %v2978
    %v3027 = vpack.c.b16 %v2981, %v2979
    %v3028 = vpack.c.b16 %v2984, %v2982
    %v3029 = vpack.c.b16 %v2985, %v2983
    %v3030 = vpack.c.b16 %v2988, %v2986
    %v3031 = vpack.c.b16 %v2989, %v2987
    %v3032 = vpack.c.b16 %v2992, %v2990
    %v3033 = vpack.c.b16 %v2993, %v2991
    %v3034 = vpack.c.b16 %v2996, %v2994
    %v3035 = vpack.c.b16 %v2997, %v2995
    %v3036 = vpack.c.b16 %v3000, %v2998
    %v3037 = vpack.c.b16 %v3001, %v2999
    %v3038 = vpack.c.b16 %v3004, %v3002
    %v3039 = vpack.c.b16 %v3005, %v3003
    %v3040 = vpack.c.b16 %v3008, %v3006
    %v3041 = vpack.c.b16 %v3009, %v3007
    %3074 = vmatprep.subr.bf16.mxu0 %v3011
    %3075 = vmatpush1.bf16.msra.mxu0 %v3010
    %3076 = vmatprep.subr.bf16.mxu0 %v3013
    %3077 = vmatpush1.bf16.msra.mxu0 %v3012
    %3078 = vmatprep.subr.bf16.mxu0 %v3015
    %3079 = vmatpush1.bf16.msra.mxu0 %v3014
    %3080 = vmatprep.subr.bf16.mxu0 %v3017
    %3081 = vmatpush1.bf16.msra.mxu0 %v3016
    %3082 = vmatprep.subr.bf16.mxu0 %v3019
    %3083 = vmatpush1.bf16.msra.mxu0 %v3018
    %3084 = vmatprep.subr.bf16.mxu0 %v3021
    %3085 = vmatpush1.bf16.msra.mxu0 %v3020
    %3086 = vmatprep.subr.bf16.mxu0 %v3023
    %3087 = vmatpush1.bf16.msra.mxu0 %v3022
    %3088 = vmatprep.subr.bf16.mxu0 %v3025
    %3089 = vmatpush1.bf16.msra.mxu0 %v3024
    %3090 = vmatprep.subr.bf16.mxu0 %v3027
    %3091 = vmatpush1.bf16.msra.mxu0 %v3026
    %3092 = vmatprep.subr.bf16.mxu0 %v3029
    %3093 = vmatpush1.bf16.msra.mxu0 %v3028
    %3094 = vmatprep.subr.bf16.mxu0 %v3031
    %3095 = vmatpush1.bf16.msra.mxu0 %v3030
    %3096 = vmatprep.subr.bf16.mxu0 %v3033
    %3097 = vmatpush1.bf16.msra.mxu0 %v3032
    %3098 = vmatprep.subr.bf16.mxu0 %v3035
    %3099 = vmatpush1.bf16.msra.mxu0 %v3034
    %3100 = vmatprep.subr.bf16.mxu0 %v3037
    %3101 = vmatpush1.bf16.msra.mxu0 %v3036
    %3102 = vmatprep.subr.bf16.mxu0 %v3039
    %3103 = vmatpush1.bf16.msra.mxu0 %v3038
    %3104 = vmatprep.subr.bf16.mxu0 %v3041
    %3105 = vmatpush1.bf16.msra.mxu0 %v3040
    %3106 = vmatprep.mubr.bf16.mxu0 %v2869
    %3107 = vmatmul.mubr.bf16.gmra.mrb[0].mxu0 %v2868
    %v3108 = vpop.f32.mrb[0].mxu0
    %v3109 = vadd.f32 %v2907, %v3108
    %v3110 = vpop.f32.mrb[0].mxu0
    %v3111 = vadd.f32 %v2911, %v3110
    %v3112 = vpop.f32.mrb[0].mxu0
    %v3113 = vpop.f32.mrb[0].mxu0
    %3114 = vdwg.mxu0
    %v3115 = vmax.f32 %v3109, 0.0
    %v3116 = vmax.f32 %v3111, 0.0
    %v3117 = vpack.c.bf16 %v3115, %v3115
    %v3118 = vpack.c.bf16 %v3116, %v3116
    %v3119 = vld [vmem:[#allocation13] sm:$0xf]
    %v3120 = vld [vmem:[#allocation13 + $0x4] sm:$0xf]
    %v3121 = vld [vmem:[#allocation13 + $0x8] sm:$0xf]
    %v3122 = vld [vmem:[#allocation13 + $0xc] sm:$0xf]
    %v3123 = vld [vmem:[#allocation13 + $0x10] sm:$0xf]
    %v3124 = vld [vmem:[#allocation13 + $0x14] sm:$0xf]
    %v3125 = vld [vmem:[#allocation13 + $0x18] sm:$0xf]
    %v3126 = vld [vmem:[#allocation13 + $0x1c] sm:$0xf]
    %v3127 = vld [vmem:[#allocation13 + $0x20] sm:$0xf]
    %v3128 = vld [vmem:[#allocation13 + $0x24] sm:$0xf]
    %v3129 = vld [vmem:[#allocation13 + $0x28] sm:$0xf]
    %v3130 = vld [vmem:[#allocation13 + $0x2c] sm:$0xf]
    %v3131 = vld [vmem:[#allocation13 + $0x30] sm:$0xf]
    %v3132 = vld [vmem:[#allocation13 + $0x34] sm:$0xf]
    %v3133 = vld [vmem:[#allocation13 + $0x38] sm:$0xf]
    %v3134 = vld [vmem:[#allocation13 + $0x3c] sm:$0xf]
    %v3135 = vld [vmem:[#allocation13 + $0x40] sm:$0xf]
    %v3136 = vld [vmem:[#allocation13 + $0x44] sm:$0xf]
    %v3137 = vld [vmem:[#allocation13 + $0x48] sm:$0xf]
    %v3138 = vld [vmem:[#allocation13 + $0x4c] sm:$0xf]
    %v3139 = vld [vmem:[#allocation13 + $0x50] sm:$0xf]
    %v3140 = vld [vmem:[#allocation13 + $0x54] sm:$0xf]
    %v3141 = vld [vmem:[#allocation13 + $0x58] sm:$0xf]
    %v3142 = vld [vmem:[#allocation13 + $0x5c] sm:$0xf]
    %v3143 = vld [vmem:[#allocation13 + $0x60] sm:$0xf]
    %v3144 = vld [vmem:[#allocation13 + $0x64] sm:$0xf]
    %v3145 = vld [vmem:[#allocation13 + $0x68] sm:$0xf]
    %v3146 = vld [vmem:[#allocation13 + $0x6c] sm:$0xf]
    %v3147 = vld [vmem:[#allocation13 + $0x70] sm:$0xf]
    %v3148 = vld [vmem:[#allocation13 + $0x74] sm:$0xf]
    %v3149 = vld [vmem:[#allocation13 + $0x78] sm:$0xf]
    %v3150 = vld [vmem:[#allocation13 + $0x7c] sm:$0xf]
    %v3151 = vld [vmem:[%s12] sm:$0x1]
    %v3153 = vlaneseq
    %v3154 = vshrl.u32 %v3153, 7
    %v3155 = vsub.s32 0, %v3154
    %v3156 = vrot.slane %v3151, %v3155
    %v3190 = vunpack.c.l.b16 %v3119
    %v3191 = vunpack.c.l.b16 %v3120
    %v3192 = vunpack.c.l.b16 %v3121
    %v3193 = vunpack.c.l.b16 %v3122
    %v3194 = vunpack.c.l.b16 %v3123
    %v3195 = vunpack.c.l.b16 %v3124
    %v3196 = vunpack.c.l.b16 %v3125
    %v3197 = vunpack.c.l.b16 %v3126
    %v3198 = vunpack.c.l.b16 %v3127
    %v3199 = vunpack.c.l.b16 %v3128
    %v3200 = vunpack.c.l.b16 %v3129
    %v3201 = vunpack.c.l.b16 %v3130
    %v3202 = vunpack.c.l.b16 %v3131
    %v3203 = vunpack.c.l.b16 %v3132
    %v3204 = vunpack.c.l.b16 %v3133
    %v3205 = vunpack.c.l.b16 %v3134
    %v3206 = vunpack.c.l.b16 %v3135
    %v3207 = vunpack.c.l.b16 %v3136
    %v3208 = vunpack.c.l.b16 %v3137
    %v3209 = vunpack.c.l.b16 %v3138
    %v3210 = vunpack.c.l.b16 %v3139
    %v3211 = vunpack.c.l.b16 %v3140
    %v3212 = vunpack.c.l.b16 %v3141
    %v3213 = vunpack.c.l.b16 %v3142
    %v3214 = vunpack.c.l.b16 %v3143
    %v3215 = vunpack.c.l.b16 %v3144
    %v3216 = vunpack.c.l.b16 %v3145
    %v3217 = vunpack.c.l.b16 %v3146
    %v3218 = vunpack.c.l.b16 %v3147
    %v3219 = vunpack.c.l.b16 %v3148
    %v3220 = vunpack.c.l.b16 %v3149
    %v3221 = vunpack.c.l.b16 %v3150
    %v3222 = vpack.c.b16 %v3191, %v3190
    %v3223 = vpack.c.b16 %v3193, %v3192
    %v3224 = vpack.c.b16 %v3195, %v3194
    %v3225 = vpack.c.b16 %v3197, %v3196
    %v3226 = vpack.c.b16 %v3199, %v3198
    %v3227 = vpack.c.b16 %v3201, %v3200
    %v3228 = vpack.c.b16 %v3203, %v3202
    %v3229 = vpack.c.b16 %v3205, %v3204
    %v3230 = vpack.c.b16 %v3207, %v3206
    %v3231 = vpack.c.b16 %v3209, %v3208
    %v3232 = vpack.c.b16 %v3211, %v3210
    %v3233 = vpack.c.b16 %v3213, %v3212
    %v3234 = vpack.c.b16 %v3215, %v3214
    %v3235 = vpack.c.b16 %v3217, %v3216
    %v3236 = vpack.c.b16 %v3219, %v3218
    %v3237 = vpack.c.b16 %v3221, %v3220
    %3254 = vmatprep.subr.bf16.mxu0 0
    %3255 = vmatpush1.bf16.msra.mxu0 %v3222
    %3256 = vmatprep.subr.bf16.mxu0 0
    %3257 = vmatpush1.bf16.msra.mxu0 %v3223
    %3258 = vmatprep.subr.bf16.mxu0 0
    %3259 = vmatpush1.bf16.msra.mxu0 %v3224
    %3260 = vmatprep.subr.bf16.mxu0 0
    %3261 = vmatpush1.bf16.msra.mxu0 %v3225
    %3262 = vmatprep.subr.bf16.mxu0 0
    %3263 = vmatpush1.bf16.msra.mxu0 %v3226
    %3264 = vmatprep.subr.bf16.mxu0 0
    %3265 = vmatpush1.bf16.msra.mxu0 %v3227
    %3266 = vmatprep.subr.bf16.mxu0 0
    %3267 = vmatpush1.bf16.msra.mxu0 %v3228
    %3268 = vmatprep.subr.bf16.mxu0 0
    %3269 = vmatpush1.bf16.msra.mxu0 %v3229
    %3270 = vmatprep.subr.bf16.mxu0 0
    %3271 = vmatpush1.bf16.msra.mxu0 %v3230
    %3272 = vmatprep.subr.bf16.mxu0 0
    %3273 = vmatpush1.bf16.msra.mxu0 %v3231
    %3274 = vmatprep.subr.bf16.mxu0 0
    %3275 = vmatpush1.bf16.msra.mxu0 %v3232
    %3276 = vmatprep.subr.bf16.mxu0 0
    %3277 = vmatpush1.bf16.msra.mxu0 %v3233
    %3278 = vmatprep.subr.bf16.mxu0 0
    %3279 = vmatpush1.bf16.msra.mxu0 %v3234
    %3280 = vmatprep.subr.bf16.mxu0 0
    %3281 = vmatpush1.bf16.msra.mxu0 %v3235
    %3282 = vmatprep.subr.bf16.mxu0 0
    %3283 = vmatpush1.bf16.msra.mxu0 %v3236
    %3284 = vmatprep.subr.bf16.mxu0 0
    %3285 = vmatpush1.bf16.msra.mxu0 %v3237
    %3286 = vmatprep.mubr.bf16.mxu0 %v3118
    %3287 = vmatmul.mubr.bf16.gmra.mrb[0].mxu0 %v3117
    %v3288 = vpop.f32.mrb[0].mxu0
    %v3289 = vadd.f32 %v3156, %v3288
    %v3290 = vpop.f32.mrb[0].mxu0
    %v3291 = vpop.f32.mrb[0].mxu0
    %v3292 = vpop.f32.mrb[0].mxu0
    %3293 = vdwg.mxu0
    %v3294 = vmax.f32 %v3289, 0.0
    %v3295 = vpack.c.bf16 %v3294, %v3294
    %v3296 = vld [vmem:[#allocation14] sm:$0xf]
    %v3297 = vld [vmem:[#allocation14 + $0x4] sm:$0xf]
    %v3298 = vld [vmem:[#allocation14 + $0x8] sm:$0xf]
    %v3299 = vld [vmem:[#allocation14 + $0xc] sm:$0xf]
    %v3300 = vld [vmem:[#allocation14 + $0x10] sm:$0xf]
    %v3301 = vld [vmem:[#allocation14 + $0x14] sm:$0xf]
    %v3302 = vld [vmem:[#allocation14 + $0x18] sm:$0xf]
    %v3303 = vld [vmem:[#allocation14 + $0x1c] sm:$0xf]
    %v3304 = vld [vmem:[#allocation14 + $0x20] sm:$0xf]
    %v3305 = vld [vmem:[#allocation14 + $0x24] sm:$0xf]
    %v3306 = vld [vmem:[#allocation14 + $0x28] sm:$0xf]
    %v3307 = vld [vmem:[#allocation14 + $0x2c] sm:$0xf]
    %v3308 = vld [vmem:[#allocation14 + $0x30] sm:$0xf]
    %v3309 = vld [vmem:[#allocation14 + $0x34] sm:$0xf]
    %v3310 = vld [vmem:[#allocation14 + $0x38] sm:$0xf]
    %v3311 = vld [vmem:[#allocation14 + $0x3c] sm:$0xf]
    %v3312 = vld [vmem:[%s14] sm:$0x1]
    %v3314 = vlaneseq
    %v3315 = vshrl.u32 %v3314, 7
    %v3316 = vsub.s32 0, %v3315
    %v3317 = vrot.slane %v3312, %v3316
    %v3335 = vunpack.c.l.b16 %v3296
    %v3336 = vunpack.c.l.b16 %v3297
    %v3337 = vunpack.c.l.b16 %v3298
    %v3338 = vunpack.c.l.b16 %v3299
    %v3339 = vunpack.c.l.b16 %v3300
    %v3340 = vunpack.c.l.b16 %v3301
    %v3341 = vunpack.c.l.b16 %v3302
    %v3342 = vunpack.c.l.b16 %v3303
    %v3343 = vunpack.c.l.b16 %v3304
    %v3344 = vunpack.c.l.b16 %v3305
    %v3345 = vunpack.c.l.b16 %v3306
    %v3346 = vunpack.c.l.b16 %v3307
    %v3347 = vunpack.c.l.b16 %v3308
    %v3348 = vunpack.c.l.b16 %v3309
    %v3349 = vunpack.c.l.b16 %v3310
    %v3350 = vunpack.c.l.b16 %v3311
    %v3351 = vpack.c.b16 %v3336, %v3335
    %v3352 = vpack.c.b16 %v3338, %v3337
    %v3353 = vpack.c.b16 %v3340, %v3339
    %v3354 = vpack.c.b16 %v3342, %v3341
    %v3355 = vpack.c.b16 %v3344, %v3343
    %v3356 = vpack.c.b16 %v3346, %v3345
    %v3357 = vpack.c.b16 %v3348, %v3347
    %v3358 = vpack.c.b16 %v3350, %v3349
    %3367 = vmatprep.subr.bf16.mxu0 0
    %3368 = vmatpush1.bf16.msra.mxu0 %v3351
    %3369 = vmatprep.subr.bf16.mxu0 0
    %3370 = vmatpush1.bf16.msra.mxu0 %v3352
    %3371 = vmatprep.subr.bf16.mxu0 0
    %3372 = vmatpush1.bf16.msra.mxu0 %v3353
    %3373 = vmatprep.subr.bf16.mxu0 0
    %3374 = vmatpush1.bf16.msra.mxu0 %v3354
    %3375 = vmatprep.subr.bf16.mxu0 0
    %3376 = vmatpush1.bf16.msra.mxu0 %v3355
    %3377 = vmatprep.subr.bf16.mxu0 0
    %3378 = vmatpush1.bf16.msra.mxu0 %v3356
    %3379 = vmatprep.subr.bf16.mxu0 0
    %3380 = vmatpush1.bf16.msra.mxu0 %v3357
    %3381 = vmatprep.subr.bf16.mxu0 0
    %3382 = vmatpush1.bf16.msra.mxu0 %v3358
    %3383 = vmatprep.subr.bf16.mxu0 0
    %3384 = vmatpush1.bf16.msra.mxu0 0
    %3385 = vmatprep.subr.bf16.mxu0 0
    %3386 = vmatpush1.bf16.msra.mxu0 0
    %3387 = vmatprep.subr.bf16.mxu0 0
    %3388 = vmatpush1.bf16.msra.mxu0 0
    %3389 = vmatprep.subr.bf16.mxu0 0
    %3390 = vmatpush1.bf16.msra.mxu0 0
    %3391 = vmatprep.subr.bf16.mxu0 0
    %3392 = vmatpush1.bf16.msra.mxu0 0
    %3393 = vmatprep.subr.bf16.mxu0 0
    %3394 = vmatpush1.bf16.msra.mxu0 0
    %3395 = vmatprep.subr.bf16.mxu0 0
    %3396 = vmatpush1.bf16.msra.mxu0 0
    %3397 = vmatprep.subr.bf16.mxu0 0
    %3398 = vmatpush1.bf16.msra.mxu0 0
    %3399 = vmatprep.mubr.bf16.mxu0 0
    %3400 = vmatmul.mubr.bf16.gmra.mrb[0].mxu0 %v3295
    %v3401 = vpop.f32.mrb[0].mxu0
    %v3402 = vadd.f32 %v3317, %v3401
    %v3403 = vpop.f32.mrb[0].mxu0
    %v3404 = vpop.f32.mrb[0].mxu0
    %v3405 = vpop.f32.mrb[0].mxu0
    %3406 = vdwg.mxu0
    %3407 = vst [vmem:[#allocation16] sm:$0xff] %v3402
    // Predicated region
    $region94: #{tpu_custom_call.1} parent=1 // pred_check
      _
    $region95: #{tpu_custom_call.1} parent=1 // pred_check_branch
      %3409 = sbr.rel (0) target = $region97
    $region96: #{tpu_custom_call.1} parent=1 // pred_region
      %s3411 = ssub.s32 128, 128
      %3412 = vsyncadd [#allocation4], %s3411
      %s3414 = sshll.u32 [#allocation16], 4
      %s3415 = int_to_ptr.vmem [resolvable:$true] %s3414
      %3417 = dma.vmem_to_hbm [thread:$0]  %s3415, 128, %s15, [#allocation4]
    $region97: #{tpu_custom_call.1} parent=1 // pred_fallthru
      _
    // Predicated region
    $region98: #{tpu_custom_call.1} parent=1 // pred_check
      _
    $region99: #{tpu_custom_call.1} parent=1 // pred_check_branch
      %3419 = sbr.rel (0) target = $region101
    $region100: #{tpu_custom_call.1} parent=1 // pred_region
      %3420 = dma.done [#allocation4], 128
    $region101: #{tpu_custom_call.1} parent=1 // pred_fallthru
      _
    %3421 = vsyncpa [#allocation3], 1
    %3422 = vsyncpa [#allocation6], 1
    %3423 = vsyncpa [#allocation9], 1
    %3424 = vsyncpa [#allocation12], 1
    %3425 = vsyncpa [#allocation15], 1
    %3426 = vsyncpa [#allocation4], 1

</llo_original>
